<compile_context>
chip_gen: v7x
topology: tpu7x:2x2x1
jax: 0.10.0
libtpu: 0.0.40
codegen_flags: <defaults>
</compile_context>

<pallas_src>
import math

import numpy as np
import jax
import jax.numpy as jnp
from jax import lax
from jax.experimental import pallas as pl
from jax.experimental.pallas import tpu as pltpu

_LN_EPS = 1e-5
_VMEM_LIMIT = 32 * 1024 * 1024          # safe on v5e/v6e (128 MiB) and v7x (64 MiB)


# ---------------------------------------------------------- in-kernel helpers

def _ln(x, g, b):
    m = jnp.mean(x, axis=-1, keepdims=True)
    c = x - m
    v = jnp.mean(c * c, axis=-1, keepdims=True)
    return c * lax.rsqrt(v + _LN_EPS) * g + b


def _ffn(x, w1, b1, w2, b2):
    h = jnp.maximum(jnp.dot(x, w1, preferred_element_type=jnp.float32) + b1, 0.0)
    return jnp.dot(h, w2, preferred_element_type=jnp.float32) + b2


def _mha(x, in_w, in_b, out_w, out_b, num_heads, valid_len):
    """Self-attention on a full (Sp, D) block; padded keys (>= valid_len) masked."""
    sp, d = x.shape
    dh = d // num_heads
    scale = 1.0 / math.sqrt(dh)
    qkv = jnp.dot(x, in_w, preferred_element_type=jnp.float32) + in_b     # (Sp, 3D)
    acc = jnp.zeros((sp, d), jnp.float32)
    for h in range(num_heads):                        # static unroll; no transposes
        q = qkv[:, h * dh:(h + 1) * dh]
        k = qkv[:, d + h * dh:d + (h + 1) * dh]
        v = qkv[:, 2 * d + h * dh:2 * d + (h + 1) * dh]
        s = jnp.einsum("qd,kd->qk", q, k,
                       preferred_element_type=jnp.float32) * scale        # (Sp, Sp)
        if valid_len != sp:                           # mask padded key rows
            kidx = lax.broadcasted_iota(jnp.int32, s.shape, 1)
            s = jnp.where(kidx < valid_len, s, -1e30)
        m = jnp.max(s, axis=-1, keepdims=True)
        p = jnp.exp(s - m)
        denom = jnp.sum(p, axis=-1, keepdims=True)
        o = jnp.dot(p, v, preferred_element_type=jnp.float32) / denom     # (Sp, dh)
        # per-head partial of the output projection (avoids head concat)
        acc = acc + jnp.dot(o, out_w[h * dh:(h + 1) * dh, :],
                            preferred_element_type=jnp.float32)
    return acc + out_b


# ------------------------------------------------------------- fused kernels

def _make_atom_block_kernel(num_heads, valid_len):
    """EncodersAttn: MHA -> Add&LN -> FFN -> Add&LN -> FFN, one kernel."""
    def kernel(xa_ref, xf_ref,
               a_inw_ref, a_inb_ref, a_ow_ref, a_ob_ref,
               g1_ref, b1_ref,
               f1w1_ref, f1b1_ref, f1w2_ref, f1b2_ref,
               g2_ref, b2_ref,
               f2w1_ref, f2b1_ref, f2w2_ref, f2b2_ref,
               trans_ref, out_ref):
        x = xa_ref[...].astype(jnp.float32) + xf_ref[...].astype(jnp.float32)
        attn = _mha(x, a_inw_ref[...], a_inb_ref[...],
                    a_ow_ref[...], a_ob_ref[...], num_heads, valid_len)
        a1 = _ln(x + attn, g1_ref[...], b1_ref[...])
        ln1 = _ffn(a1, f1w1_ref[...], f1b1_ref[...], f1w2_ref[...], f1b2_ref[...])
        a2 = _ln(a1 + ln1, g2_ref[...], b2_ref[...])
        out = _ffn(a2, f2w1_ref[...], f2b1_ref[...], f2w2_ref[...], f2b2_ref[...])
        trans_ref[...] = ln1.astype(trans_ref.dtype)     # atom_trans (fw1 output)
        out_ref[...] = out.astype(out_ref.dtype)         # atom_out   (fw2 output)
    return kernel


def _make_fasta_block_kernel(num_heads, valid_len):
    """Fasta branch: cross-MHA -> Add&LN -> FFN (lrl), one kernel."""
    def kernel(xf_ref, xa_ref,
               c_inw_ref, c_inb_ref, c_ow_ref, c_ob_ref,
               g_ref, b_ref,
               lw1_ref, lb1_ref, lw2_ref, lb2_ref,
               out_ref):
        x = xf_ref[...].astype(jnp.float32) + xa_ref[...].astype(jnp.float32)
        attn = _mha(x, c_inw_ref[...], c_inb_ref[...],
                    c_ow_ref[...], c_ob_ref[...], num_heads, valid_len)
        ft = _ln(x + attn, g_ref[...], b_ref[...])
        out = _ffn(ft, lw1_ref[...], lb1_ref[...], lw2_ref[...], lb2_ref[...])
        out_ref[...] = out.astype(out_ref.dtype)
    return kernel


# ----------------------------------------------------------------- wrappers

def _round_up(x, m):
    return ((x + m - 1) // m) * m


def _pad_rows(x2d, rows):
    m = x2d.shape[0]
    if rows != m:
        x2d = jnp.pad(x2d, ((0, rows - m), (0, 0)))
    return x2d


def _full_spec(shape):
    nd = len(shape)
    return pl.BlockSpec(shape, lambda i: (0,) * nd)


def _fused_block_call(kernel, args, out_shapes):
    """Single-step grid; every operand is one full-array VMEM block."""
    return pl.pallas_call(
        kernel,
        out_shape=out_shapes,
        grid_spec=pltpu.PrefetchScalarGridSpec(
            num_scalar_prefetch=0,
            grid=(1,),
            in_specs=[_full_spec(a.shape) for a in args],
            out_specs=[_full_spec(s.shape) for s in out_shapes],
        ),
        compiler_params=pltpu.CompilerParams(
            dimension_semantics=("arbitrary",),
            vmem_limit_bytes=_VMEM_LIMIT),
    )(*args)


# ------------------------------------------------------- AlignFormer forward

def align_former_forward(p, out_atom, out_fasta, query_list, centroids,
                         num_heads):
    _, n_fasta, dim = out_fasta.shape
    n_atoms = out_atom.shape[1]
    aout = p["enc_fw2"]["w2"].shape[1]

    # AlignCount.aligns: repeat fasta row i query_list[i] times.
    # TODO(synk): ragged repeat stays as host-built indices + one XLA gather.
    seg = jnp.asarray(np.repeat(np.arange(n_fasta), np.asarray(query_list)),
                      dtype=jnp.int32)
    align_fasta = jnp.take(out_fasta[0], seg, axis=0)                # (S, D)

    # Pad once, stay padded end-to-end (attention masks padded keys in-kernel).
    sp = _round_up(n_atoms, 8)
    fp = _round_up(n_fasta, 8)
    atom_x = _pad_rows(out_atom[0], sp)
    align_x = _pad_rows(align_fasta, sp)
    fasta_x = _pad_rows(out_fasta[0], fp)

    # Fused EncodersAttn block: one pallas_call.
    a, f1, f2 = p["enc_attn"], p["enc_fw1"], p["enc_fw2"]
    atom_args = [
        atom_x, align_x,
        a["in_w"], a["in_b"].reshape(1, -1), a["out_w"], a["out_b"].reshape(1, -1),
        p["enc_ln1"]["g"].reshape(1, -1), p["enc_ln1"]["b"].reshape(1, -1),
        f1["w1"], f1["b1"].reshape(1, -1), f1["w2"], f1["b2"].reshape(1, -1),
        p["enc_ln2"]["g"].reshape(1, -1), p["enc_ln2"]["b"].reshape(1, -1),
        f2["w1"], f2["b1"].reshape(1, -1), f2["w2"], f2["b2"].reshape(1, -1),
    ]
    atom_trans, atom_out = _fused_block_call(
        _make_atom_block_kernel(num_heads, n_atoms), atom_args,
        (jax.ShapeDtypeStruct((sp, dim), jnp.float32),
         jax.ShapeDtypeStruct((sp, aout), jnp.float32)))

    # Centroid gather + max-pool + accumulate: ONE fused gather.
    idx_all = jnp.stack([c[0] for c in centroids], axis=0)           # (nc, F, ns)
    nc, _, ns = idx_all.shape
    gathered = jnp.take(atom_trans, idx_all.reshape(-1), axis=0)
    gathered = gathered.reshape(nc, n_fasta, ns, dim)
    out_align = jnp.sum(jnp.max(gathered, axis=2), axis=0)           # (F, D)
    align_x2 = _pad_rows(out_align, fp)

    # Fused fasta branch: one pallas_call.
    c, l = p["cross_attn"], p["lrl"]
    fasta_args = [
        fasta_x, align_x2,
        c["in_w"], c["in_b"].reshape(1, -1), c["out_w"], c["out_b"].reshape(1, -1),
        p["ans2"]["g"].reshape(1, -1), p["ans2"]["b"].reshape(1, -1),
        l["w1"], l["b1"].reshape(1, -1), l["w2"], l["b2"].reshape(1, -1),
    ]
    (fasta_trans,) = _fused_block_call(
        _make_fasta_block_kernel(num_heads, n_fasta), fasta_args,
        (jax.ShapeDtypeStruct((fp, aout), jnp.float32),))

    return atom_out[:n_atoms][None], fasta_trans[:n_fasta][None]


# ------------------------------------------------------------ pure-JAX ref ---

def _ref_ffn(x, w1, b1, w2, b2):
    return jnp.maximum(x @ w1 + b1, 0.0) @ w2 + b2


def _ref_add_ln(x1, x2, g, b, eps=_LN_EPS):
    s = x1 + x2
    m = jnp.mean(s, axis=-1, keepdims=True)
    v = jnp.mean((s - m) ** 2, axis=-1, keepdims=True)
    return (s - m) / jnp.sqrt(v + eps) * g + b


def _ref_mha(x, in_w, in_b, out_w, out_b, num_heads):
    bsz, seq, dim = x.shape
    dh = dim // num_heads
    qkv = x @ in_w + in_b
    q, k, v = jnp.split(qkv, 3, axis=-1)

    def split_heads(t):
        return t.reshape(bsz, seq, num_heads, dh).transpose(0, 2, 1, 3)

    q, k, v = split_heads(q), split_heads(k), split_heads(v)
    s = jnp.einsum("bhqd,bhkd->bhqk", q, k) / math.sqrt(dh)
    pattn = jax.nn.softmax(s, axis=-1)
    o = jnp.einsum("bhqk,bhkd->bhqd", pattn, v)
    o = o.transpose(0, 2, 1, 3).reshape(bsz, seq, dim)
    return o @ out_w + out_b


def _reference_forward(p, out_atom, out_fasta, query_list, centroids,
                       num_heads):
    _, n_fasta, dim = out_fasta.shape
    seg = jnp.asarray(np.repeat(np.arange(n_fasta), np.asarray(query_list)),
                      dtype=jnp.int32)
    align_fasta = jnp.take(out_fasta[0], seg, axis=0)[None]
    atom_in = out_atom + align_fasta

    a = p["enc_attn"]
    attn_out = _ref_mha(atom_in, a["in_w"], a["in_b"], a["out_w"], a["out_b"],
                        num_heads)
    a1 = _ref_add_ln(atom_in, attn_out, p["enc_ln1"]["g"], p["enc_ln1"]["b"])
    f1 = p["enc_fw1"]
    ln1 = _ref_ffn(a1, f1["w1"], f1["b1"], f1["w2"], f1["b2"])
    a2 = _ref_add_ln(a1, ln1, p["enc_ln2"]["g"], p["enc_ln2"]["b"])
    f2 = p["enc_fw2"]
    atom_out = _ref_ffn(a2, f2["w1"], f2["b1"], f2["w2"], f2["b2"])
    atom_trans = ln1

    out_align = jnp.zeros((n_fasta, dim), out_fasta.dtype)
    for idx in centroids:
        gathered = jnp.take(atom_trans[0], idx[0], axis=0)
        out_align = out_align + jnp.max(gathered, axis=1)

    fasta_q = out_fasta + out_align[None]
    c = p["cross_attn"]
    ft_attn = _ref_mha(fasta_q, c["in_w"], c["in_b"], c["out_w"], c["out_b"],
                       num_heads)
    ft = _ref_add_ln(fasta_q, ft_attn, p["ans2"]["g"], p["ans2"]["b"])
    l = p["lrl"]
    fasta_trans = _ref_ffn(ft, l["w1"], l["b1"], l["w2"], l["b2"])
    return atom_out, fasta_trans


# -------------------------------------------------------------------- params --

def _init_params(key, aem_dim, aout_dim):
    fmid1 = aem_dim * 2
    fmid2 = (aout_dim + aem_dim) // 2
    keys = iter(jax.random.split(key, 32))

    def lin(din, dout):
        w = 0.1 * jax.random.normal(next(keys), (din, dout), dtype=jnp.float32)
        b = 0.1 * jax.random.normal(next(keys), (dout,), dtype=jnp.float32)
        return w, b

    def ln(d):
        g = 1.0 + 0.1 * jax.random.normal(next(keys), (d,), dtype=jnp.float32)
        b = 0.1 * jax.random.normal(next(keys), (d,), dtype=jnp.float32)
        return g, b

    p = {}
    w, b = lin(aem_dim, 3 * aem_dim); ow, ob = lin(aem_dim, aem_dim)
    p["enc_attn"] = {"in_w": w, "in_b": b, "out_w": ow, "out_b": ob}
    g, bb = ln(aem_dim); p["enc_ln1"] = {"g": g, "b": bb}
    w1, b1 = lin(aem_dim, fmid1); w2, b2 = lin(fmid1, aem_dim)
    p["enc_fw1"] = {"w1": w1, "b1": b1, "w2": w2, "b2": b2}
    g, bb = ln(aem_dim); p["enc_ln2"] = {"g": g, "b": bb}
    w1, b1 = lin(aem_dim, fmid2); w2, b2 = lin(fmid2, aout_dim)
    p["enc_fw2"] = {"w1": w1, "b1": b1, "w2": w2, "b2": b2}
    w, b = lin(aem_dim, 3 * aem_dim); ow, ob = lin(aem_dim, aem_dim)
    p["cross_attn"] = {"in_w": w, "in_b": b, "out_w": ow, "out_b": ob}
    g, bb = ln(aem_dim); p["ans2"] = {"g": g, "b": bb}
    w1, b1 = lin(aem_dim, fmid2); w2, b2 = lin(fmid2, aout_dim)
    p["lrl"] = {"w1": w1, "b1": b1, "w2": w2, "b2": b2}
    return p


if __name__ == "__main__":
    aem_dim, aout_dim, aheads = 32, 16, 4
    n_fasta = 6
    query_list = [3, 2, 4, 1, 3, 3]             # sums to 16 atoms
    n_atoms = int(sum(query_list))
    n_sample = 4
    n_centroids = 2

    root = jax.random.PRNGKey(0)
    k_par, k_atom, k_fasta, k_cent = jax.random.split(root, 4)

    params = _init_params(k_par, aem_dim, aout_dim)
    out_atom = jax.random.normal(k_atom, (1, n_atoms, aem_dim), dtype=jnp.float32)
    out_fasta = jax.random.normal(k_fasta, (1, n_fasta, aem_dim), dtype=jnp.float32)
    cent_keys = jax.random.split(k_cent, n_centroids)
    centroids = [jax.random.randint(ck, (1, n_fasta, n_sample), 0, n_atoms,
                                    dtype=jnp.int32) for ck in cent_keys]

    atom_out, fasta_trans = align_former_forward(
        params, out_atom, out_fasta, query_list, centroids, aheads)
    atom_out = jax.block_until_ready(atom_out)
    fasta_trans = jax.block_until_ready(fasta_trans)

    ref_atom_out, ref_fasta_trans = _reference_forward(
        params, out_atom, out_fasta, query_list, centroids, aheads)

    assert atom_out.shape == (1, n_atoms, aout_dim)
    assert fasta_trans.shape == (1, n_fasta, aout_dim)
    assert jnp.allclose(atom_out, ref_atom_out, atol=1e-4, rtol=1e-4), (
        float(jnp.max(jnp.abs(atom_out - ref_atom_out))))
    assert jnp.allclose(fasta_trans, ref_fasta_trans, atol=1e-4, rtol=1e-4), (
        float(jnp.max(jnp.abs(fasta_trans - ref_fasta_trans))))

    print("KERNEL_OK")
</pallas_src>

<mosaic_0001>
module attributes {stable_mosaic.version = 11 : i64} {
  func.func @kernel(%arg0: i32, %arg1: memref<16x32xf32, #tpu.memory_space<vmem>>, %arg2: memref<16x32xf32, #tpu.memory_space<vmem>>, %arg3: memref<32x96xf32, #tpu.memory_space<vmem>>, %arg4: memref<1x96xf32, #tpu.memory_space<vmem>>, %arg5: memref<32x32xf32, #tpu.memory_space<vmem>>, %arg6: memref<1x32xf32, #tpu.memory_space<vmem>>, %arg7: memref<1x32xf32, #tpu.memory_space<vmem>>, %arg8: memref<1x32xf32, #tpu.memory_space<vmem>>, %arg9: memref<32x64xf32, #tpu.memory_space<vmem>>, %arg10: memref<1x64xf32, #tpu.memory_space<vmem>>, %arg11: memref<64x32xf32, #tpu.memory_space<vmem>>, %arg12: memref<1x32xf32, #tpu.memory_space<vmem>>, %arg13: memref<1x32xf32, #tpu.memory_space<vmem>>, %arg14: memref<1x32xf32, #tpu.memory_space<vmem>>, %arg15: memref<32x24xf32, #tpu.memory_space<vmem>>, %arg16: memref<1x24xf32, #tpu.memory_space<vmem>>, %arg17: memref<24x16xf32, #tpu.memory_space<vmem>>, %arg18: memref<1x16xf32, #tpu.memory_space<vmem>>, %arg19: memref<16x32xf32, #tpu.memory_space<vmem>>, %arg20: memref<16x16xf32, #tpu.memory_space<vmem>>) attributes {dimension_semantics = [#tpu.dimension_semantics<arbitrary>], iteration_bounds = array<i64: 1>, scalar_prefetch = 0 : i64, scratch_operands = 0 : i64, tpu.core_type = #tpu.core_type<tc>, window_params = [{pipeline_mode = #tpu.pipeline_mode<synchronous>, transform_indices = @transform_0, window_bounds = array<i64: 16, 32>}, {pipeline_mode = #tpu.pipeline_mode<synchronous>, transform_indices = @transform_1, window_bounds = array<i64: 16, 32>}, {pipeline_mode = #tpu.pipeline_mode<synchronous>, transform_indices = @transform_2, window_bounds = array<i64: 32, 96>}, {pipeline_mode = #tpu.pipeline_mode<synchronous>, transform_indices = @transform_3, window_bounds = array<i64: 1, 96>}, {pipeline_mode = #tpu.pipeline_mode<synchronous>, transform_indices = @transform_4, window_bounds = array<i64: 32, 32>}, {pipeline_mode = #tpu.pipeline_mode<synchronous>, transform_indices = @transform_5, window_bounds = array<i64: 1, 32>}, {pipeline_mode = #tpu.pipeline_mode<synchronous>, transform_indices = @transform_6, window_bounds = array<i64: 1, 32>}, {pipeline_mode = #tpu.pipeline_mode<synchronous>, transform_indices = @transform_7, window_bounds = array<i64: 1, 32>}, {pipeline_mode = #tpu.pipeline_mode<synchronous>, transform_indices = @transform_8, window_bounds = array<i64: 32, 64>}, {pipeline_mode = #tpu.pipeline_mode<synchronous>, transform_indices = @transform_9, window_bounds = array<i64: 1, 64>}, {pipeline_mode = #tpu.pipeline_mode<synchronous>, transform_indices = @transform_10, window_bounds = array<i64: 64, 32>}, {pipeline_mode = #tpu.pipeline_mode<synchronous>, transform_indices = @transform_11, window_bounds = array<i64: 1, 32>}, {pipeline_mode = #tpu.pipeline_mode<synchronous>, transform_indices = @transform_12, window_bounds = array<i64: 1, 32>}, {pipeline_mode = #tpu.pipeline_mode<synchronous>, transform_indices = @transform_13, window_bounds = array<i64: 1, 32>}, {pipeline_mode = #tpu.pipeline_mode<synchronous>, transform_indices = @transform_14, window_bounds = array<i64: 32, 24>}, {pipeline_mode = #tpu.pipeline_mode<synchronous>, transform_indices = @transform_15, window_bounds = array<i64: 1, 24>}, {pipeline_mode = #tpu.pipeline_mode<synchronous>, transform_indices = @transform_16, window_bounds = array<i64: 24, 16>}, {pipeline_mode = #tpu.pipeline_mode<synchronous>, transform_indices = @transform_17, window_bounds = array<i64: 1, 16>}, {pipeline_mode = #tpu.pipeline_mode<synchronous>, transform_indices = @transform_18, window_bounds = array<i64: 16, 32>}, {pipeline_mode = #tpu.pipeline_mode<synchronous>, transform_indices = @transform_19, window_bounds = array<i64: 16, 16>}]} {
    %c0 = arith.constant 0 : index
    %c0_0 = arith.constant 0 : index
    %0 = vector.load %arg1[%c0, %c0_0] : memref<16x32xf32, #tpu.memory_space<vmem>>, vector<16x32xf32>
    %c0_1 = arith.constant 0 : index
    %c0_2 = arith.constant 0 : index
    %1 = vector.load %arg2[%c0_1, %c0_2] : memref<16x32xf32, #tpu.memory_space<vmem>>, vector<16x32xf32>
    %2 = arith.addf %0, %1 : vector<16x32xf32>
    %c0_3 = arith.constant 0 : index
    %c0_4 = arith.constant 0 : index
    %3 = vector.load %arg3[%c0_3, %c0_4] : memref<32x96xf32, #tpu.memory_space<vmem>>, vector<32x96xf32>
    %c0_5 = arith.constant 0 : index
    %c0_6 = arith.constant 0 : index
    %4 = vector.load %arg4[%c0_5, %c0_6] : memref<1x96xf32, #tpu.memory_space<vmem>>, vector<1x96xf32>
    %c0_7 = arith.constant 0 : index
    %c0_8 = arith.constant 0 : index
    %5 = vector.load %arg5[%c0_7, %c0_8] : memref<32x32xf32, #tpu.memory_space<vmem>>, vector<32x32xf32>
    %c0_9 = arith.constant 0 : index
    %c0_10 = arith.constant 0 : index
    %6 = vector.load %arg6[%c0_9, %c0_10] : memref<1x32xf32, #tpu.memory_space<vmem>>, vector<1x32xf32>
    %cst = arith.constant dense<0.000000e+00> : vector<16x96xf32>
    %7 = tpu.matmul %2, %3, %cst {dimension_numbers = #tpu.dot_dimension_numbers<[1], [0], [0], [1], [0, 0, 1, 1], [], []>} : vector<16x32xf32>, vector<32x96xf32>, vector<16x96xf32> -> vector<16x96xf32>
    %8 = vector.broadcast %4 : vector<1x96xf32> to vector<16x96xf32>
    %9 = arith.addf %7, %8 : vector<16x96xf32>
    %cst_11 = arith.constant 0.000000e+00 : f32
    %10 = vector.broadcast %cst_11 : f32 to vector<16x32xf32>
    %11 = vector.extract_strided_slice %9 {offsets = [0, 0], sizes = [16, 8], strides = [1, 1]} : vector<16x96xf32> to vector<16x8xf32>
    %12 = vector.extract_strided_slice %9 {offsets = [0, 32], sizes = [16, 8], strides = [1, 1]} : vector<16x96xf32> to vector<16x8xf32>
    %13 = vector.extract_strided_slice %9 {offsets = [0, 64], sizes = [16, 8], strides = [1, 1]} : vector<16x96xf32> to vector<16x8xf32>
    "tpu.trace_start"() <{level = 10 : i32, message = "qd,kd->qk"}> : () -> ()
    %cst_12 = arith.constant dense<0.000000e+00> : vector<16x16xf32>
    %14 = tpu.matmul %11, %12, %cst_12 {dimension_numbers = #tpu.dot_dimension_numbers<[1], [1], [0], [0], [0, 0, 1, 0], [], []>} : vector<16x8xf32>, vector<16x8xf32>, vector<16x16xf32> -> vector<16x16xf32>
    "tpu.trace_stop"() : () -> ()
    %cst_13 = arith.constant 0.353553385 : f32
    %15 = vector.broadcast %cst_13 : f32 to vector<16x16xf32>
    %16 = arith.mulf %14, %15 : vector<16x16xf32>
    %cst_14 = arith.constant dense<0xFF800000> : vector<16xf32>
    %17 = vector.multi_reduction <maximumf>, %16, %cst_14 [1] : vector<16x16xf32> to vector<16xf32>
    %18 = vector.shape_cast %17 : vector<16xf32> to vector<16x1xf32>
    %19 = vector.broadcast %18 : vector<16x1xf32> to vector<16x16xf32>
    %20 = arith.subf %16, %19 : vector<16x16xf32>
    %21 = math.exp %20 : vector<16x16xf32>
    %cst_15 = arith.constant dense<0.000000e+00> : vector<16xf32>
    %22 = vector.multi_reduction <add>, %21, %cst_15 [1] : vector<16x16xf32> to vector<16xf32>
    %23 = vector.shape_cast %22 : vector<16xf32> to vector<16x1xf32>
    %cst_16 = arith.constant dense<0.000000e+00> : vector<16x8xf32>
    %24 = tpu.matmul %21, %13, %cst_16 {dimension_numbers = #tpu.dot_dimension_numbers<[1], [0], [0], [1], [0, 0, 1, 1], [], []>} : vector<16x16xf32>, vector<16x8xf32>, vector<16x8xf32> -> vector<16x8xf32>
    %25 = vector.broadcast %23 : vector<16x1xf32> to vector<16x8xf32>
    %26 = arith.divf %24, %25 : vector<16x8xf32>
    %27 = vector.extract_strided_slice %5 {offsets = [0, 0], sizes = [8, 32], strides = [1, 1]} : vector<32x32xf32> to vector<8x32xf32>
    %cst_17 = arith.constant dense<0.000000e+00> : vector<16x32xf32>
    %28 = tpu.matmul %26, %27, %cst_17 {dimension_numbers = #tpu.dot_dimension_numbers<[1], [0], [0], [1], [0, 0, 1, 1], [], []>} : vector<16x8xf32>, vector<8x32xf32>, vector<16x32xf32> -> vector<16x32xf32>
    %29 = arith.addf %10, %28 : vector<16x32xf32>
    %30 = vector.extract_strided_slice %9 {offsets = [0, 8], sizes = [16, 8], strides = [1, 1]} : vector<16x96xf32> to vector<16x8xf32>
    %31 = vector.extract_strided_slice %9 {offsets = [0, 40], sizes = [16, 8], strides = [1, 1]} : vector<16x96xf32> to vector<16x8xf32>
    %32 = vector.extract_strided_slice %9 {offsets = [0, 72], sizes = [16, 8], strides = [1, 1]} : vector<16x96xf32> to vector<16x8xf32>
    "tpu.trace_start"() <{level = 10 : i32, message = "qd,kd->qk"}> : () -> ()
    %cst_18 = arith.constant dense<0.000000e+00> : vector<16x16xf32>
    %33 = tpu.matmul %30, %31, %cst_18 {dimension_numbers = #tpu.dot_dimension_numbers<[1], [1], [0], [0], [0, 0, 1, 0], [], []>} : vector<16x8xf32>, vector<16x8xf32>, vector<16x16xf32> -> vector<16x16xf32>
    "tpu.trace_stop"() : () -> ()
    %cst_19 = arith.constant 0.353553385 : f32
    %34 = vector.broadcast %cst_19 : f32 to vector<16x16xf32>
    %35 = arith.mulf %33, %34 : vector<16x16xf32>
    %cst_20 = arith.constant dense<0xFF800000> : vector<16xf32>
    %36 = vector.multi_reduction <maximumf>, %35, %cst_20 [1] : vector<16x16xf32> to vector<16xf32>
    %37 = vector.shape_cast %36 : vector<16xf32> to vector<16x1xf32>
    %38 = vector.broadcast %37 : vector<16x1xf32> to vector<16x16xf32>
    %39 = arith.subf %35, %38 : vector<16x16xf32>
    %40 = math.exp %39 : vector<16x16xf32>
    %cst_21 = arith.constant dense<0.000000e+00> : vector<16xf32>
    %41 = vector.multi_reduction <add>, %40, %cst_21 [1] : vector<16x16xf32> to vector<16xf32>
    %42 = vector.shape_cast %41 : vector<16xf32> to vector<16x1xf32>
    %cst_22 = arith.constant dense<0.000000e+00> : vector<16x8xf32>
    %43 = tpu.matmul %40, %32, %cst_22 {dimension_numbers = #tpu.dot_dimension_numbers<[1], [0], [0], [1], [0, 0, 1, 1], [], []>} : vector<16x16xf32>, vector<16x8xf32>, vector<16x8xf32> -> vector<16x8xf32>
    %44 = vector.broadcast %42 : vector<16x1xf32> to vector<16x8xf32>
    %45 = arith.divf %43, %44 : vector<16x8xf32>
    %46 = vector.extract_strided_slice %5 {offsets = [8, 0], sizes = [8, 32], strides = [1, 1]} : vector<32x32xf32> to vector<8x32xf32>
    %cst_23 = arith.constant dense<0.000000e+00> : vector<16x32xf32>
    %47 = tpu.matmul %45, %46, %cst_23 {dimension_numbers = #tpu.dot_dimension_numbers<[1], [0], [0], [1], [0, 0, 1, 1], [], []>} : vector<16x8xf32>, vector<8x32xf32>, vector<16x32xf32> -> vector<16x32xf32>
    %48 = arith.addf %29, %47 : vector<16x32xf32>
    %49 = vector.extract_strided_slice %9 {offsets = [0, 16], sizes = [16, 8], strides = [1, 1]} : vector<16x96xf32> to vector<16x8xf32>
    %50 = vector.extract_strided_slice %9 {offsets = [0, 48], sizes = [16, 8], strides = [1, 1]} : vector<16x96xf32> to vector<16x8xf32>
    %51 = vector.extract_strided_slice %9 {offsets = [0, 80], sizes = [16, 8], strides = [1, 1]} : vector<16x96xf32> to vector<16x8xf32>
    "tpu.trace_start"() <{level = 10 : i32, message = "qd,kd->qk"}> : () -> ()
    %cst_24 = arith.constant dense<0.000000e+00> : vector<16x16xf32>
    %52 = tpu.matmul %49, %50, %cst_24 {dimension_numbers = #tpu.dot_dimension_numbers<[1], [1], [0], [0], [0, 0, 1, 0], [], []>} : vector<16x8xf32>, vector<16x8xf32>, vector<16x16xf32> -> vector<16x16xf32>
    "tpu.trace_stop"() : () -> ()
    %cst_25 = arith.constant 0.353553385 : f32
    %53 = vector.broadcast %cst_25 : f32 to vector<16x16xf32>
    %54 = arith.mulf %52, %53 : vector<16x16xf32>
    %cst_26 = arith.constant dense<0xFF800000> : vector<16xf32>
    %55 = vector.multi_reduction <maximumf>, %54, %cst_26 [1] : vector<16x16xf32> to vector<16xf32>
    %56 = vector.shape_cast %55 : vector<16xf32> to vector<16x1xf32>
    %57 = vector.broadcast %56 : vector<16x1xf32> to vector<16x16xf32>
    %58 = arith.subf %54, %57 : vector<16x16xf32>
    %59 = math.exp %58 : vector<16x16xf32>
    %cst_27 = arith.constant dense<0.000000e+00> : vector<16xf32>
    %60 = vector.multi_reduction <add>, %59, %cst_27 [1] : vector<16x16xf32> to vector<16xf32>
    %61 = vector.shape_cast %60 : vector<16xf32> to vector<16x1xf32>
    %cst_28 = arith.constant dense<0.000000e+00> : vector<16x8xf32>
    %62 = tpu.matmul %59, %51, %cst_28 {dimension_numbers = #tpu.dot_dimension_numbers<[1], [0], [0], [1], [0, 0, 1, 1], [], []>} : vector<16x16xf32>, vector<16x8xf32>, vector<16x8xf32> -> vector<16x8xf32>
    %63 = vector.broadcast %61 : vector<16x1xf32> to vector<16x8xf32>
    %64 = arith.divf %62, %63 : vector<16x8xf32>
    %65 = vector.extract_strided_slice %5 {offsets = [16, 0], sizes = [8, 32], strides = [1, 1]} : vector<32x32xf32> to vector<8x32xf32>
    %cst_29 = arith.constant dense<0.000000e+00> : vector<16x32xf32>
    %66 = tpu.matmul %64, %65, %cst_29 {dimension_numbers = #tpu.dot_dimension_numbers<[1], [0], [0], [1], [0, 0, 1, 1], [], []>} : vector<16x8xf32>, vector<8x32xf32>, vector<16x32xf32> -> vector<16x32xf32>
    %67 = arith.addf %48, %66 : vector<16x32xf32>
    %68 = vector.extract_strided_slice %9 {offsets = [0, 24], sizes = [16, 8], strides = [1, 1]} : vector<16x96xf32> to vector<16x8xf32>
    %69 = vector.extract_strided_slice %9 {offsets = [0, 56], sizes = [16, 8], strides = [1, 1]} : vector<16x96xf32> to vector<16x8xf32>
    %70 = vector.extract_strided_slice %9 {offsets = [0, 88], sizes = [16, 8], strides = [1, 1]} : vector<16x96xf32> to vector<16x8xf32>
    "tpu.trace_start"() <{level = 10 : i32, message = "qd,kd->qk"}> : () -> ()
    %cst_30 = arith.constant dense<0.000000e+00> : vector<16x16xf32>
    %71 = tpu.matmul %68, %69, %cst_30 {dimension_numbers = #tpu.dot_dimension_numbers<[1], [1], [0], [0], [0, 0, 1, 0], [], []>} : vector<16x8xf32>, vector<16x8xf32>, vector<16x16xf32> -> vector<16x16xf32>
    "tpu.trace_stop"() : () -> ()
    %cst_31 = arith.constant 0.353553385 : f32
    %72 = vector.broadcast %cst_31 : f32 to vector<16x16xf32>
    %73 = arith.mulf %71, %72 : vector<16x16xf32>
    %cst_32 = arith.constant dense<0xFF800000> : vector<16xf32>
    %74 = vector.multi_reduction <maximumf>, %73, %cst_32 [1] : vector<16x16xf32> to vector<16xf32>
    %75 = vector.shape_cast %74 : vector<16xf32> to vector<16x1xf32>
    %76 = vector.broadcast %75 : vector<16x1xf32> to vector<16x16xf32>
    %77 = arith.subf %73, %76 : vector<16x16xf32>
    %78 = math.exp %77 : vector<16x16xf32>
    %cst_33 = arith.constant dense<0.000000e+00> : vector<16xf32>
    %79 = vector.multi_reduction <add>, %78, %cst_33 [1] : vector<16x16xf32> to vector<16xf32>
    %80 = vector.shape_cast %79 : vector<16xf32> to vector<16x1xf32>
    %cst_34 = arith.constant dense<0.000000e+00> : vector<16x8xf32>
    %81 = tpu.matmul %78, %70, %cst_34 {dimension_numbers = #tpu.dot_dimension_numbers<[1], [0], [0], [1], [0, 0, 1, 1], [], []>} : vector<16x16xf32>, vector<16x8xf32>, vector<16x8xf32> -> vector<16x8xf32>
    %82 = vector.broadcast %80 : vector<16x1xf32> to vector<16x8xf32>
    %83 = arith.divf %81, %82 : vector<16x8xf32>
    %84 = vector.extract_strided_slice %5 {offsets = [24, 0], sizes = [8, 32], strides = [1, 1]} : vector<32x32xf32> to vector<8x32xf32>
    %cst_35 = arith.constant dense<0.000000e+00> : vector<16x32xf32>
    %85 = tpu.matmul %83, %84, %cst_35 {dimension_numbers = #tpu.dot_dimension_numbers<[1], [0], [0], [1], [0, 0, 1, 1], [], []>} : vector<16x8xf32>, vector<8x32xf32>, vector<16x32xf32> -> vector<16x32xf32>
    %86 = arith.addf %67, %85 : vector<16x32xf32>
    %87 = vector.broadcast %6 : vector<1x32xf32> to vector<16x32xf32>
    %88 = arith.addf %86, %87 : vector<16x32xf32>
    %89 = arith.addf %2, %88 : vector<16x32xf32>
    %c0_36 = arith.constant 0 : index
    %c0_37 = arith.constant 0 : index
    %90 = vector.load %arg7[%c0_36, %c0_37] : memref<1x32xf32, #tpu.memory_space<vmem>>, vector<1x32xf32>
    %c0_38 = arith.constant 0 : index
    %c0_39 = arith.constant 0 : index
    %91 = vector.load %arg8[%c0_38, %c0_39] : memref<1x32xf32, #tpu.memory_space<vmem>>, vector<1x32xf32>
    %cst_40 = arith.constant dense<0.000000e+00> : vector<16xf32>
    %92 = vector.multi_reduction <add>, %89, %cst_40 [1] : vector<16x32xf32> to vector<16xf32>
    %93 = vector.shape_cast %92 : vector<16xf32> to vector<16x1xf32>
    %cst_41 = arith.constant 3.200000e+01 : f32
    %94 = vector.broadcast %cst_41 : f32 to vector<16x1xf32>
    %95 = arith.divf %93, %94 : vector<16x1xf32>
    %96 = vector.broadcast %95 : vector<16x1xf32> to vector<16x32xf32>
    %97 = arith.subf %89, %96 : vector<16x32xf32>
    %98 = arith.mulf %97, %97 : vector<16x32xf32>
    %cst_42 = arith.constant dense<0.000000e+00> : vector<16xf32>
    %99 = vector.multi_reduction <add>, %98, %cst_42 [1] : vector<16x32xf32> to vector<16xf32>
    %100 = vector.shape_cast %99 : vector<16xf32> to vector<16x1xf32>
    %cst_43 = arith.constant 3.200000e+01 : f32
    %101 = vector.broadcast %cst_43 : f32 to vector<16x1xf32>
    %102 = arith.divf %100, %101 : vector<16x1xf32>
    %cst_44 = arith.constant 9.99999974E-6 : f32
    %103 = vector.broadcast %cst_44 : f32 to vector<16x1xf32>
    %104 = arith.addf %102, %103 : vector<16x1xf32>
    %105 = math.rsqrt %104 : vector<16x1xf32>
    %106 = vector.broadcast %105 : vector<16x1xf32> to vector<16x32xf32>
    %107 = arith.mulf %97, %106 : vector<16x32xf32>
    %108 = vector.broadcast %90 : vector<1x32xf32> to vector<16x32xf32>
    %109 = arith.mulf %107, %108 : vector<16x32xf32>
    %110 = vector.broadcast %91 : vector<1x32xf32> to vector<16x32xf32>
    %111 = arith.addf %109, %110 : vector<16x32xf32>
    %c0_45 = arith.constant 0 : index
    %c0_46 = arith.constant 0 : index
    %112 = vector.load %arg9[%c0_45, %c0_46] : memref<32x64xf32, #tpu.memory_space<vmem>>, vector<32x64xf32>
    %c0_47 = arith.constant 0 : index
    %c0_48 = arith.constant 0 : index
    %113 = vector.load %arg10[%c0_47, %c0_48] : memref<1x64xf32, #tpu.memory_space<vmem>>, vector<1x64xf32>
    %c0_49 = arith.constant 0 : index
    %c0_50 = arith.constant 0 : index
    %114 = vector.load %arg11[%c0_49, %c0_50] : memref<64x32xf32, #tpu.memory_space<vmem>>, vector<64x32xf32>
    %c0_51 = arith.constant 0 : index
    %c0_52 = arith.constant 0 : index
    %115 = vector.load %arg12[%c0_51, %c0_52] : memref<1x32xf32, #tpu.memory_space<vmem>>, vector<1x32xf32>
    %cst_53 = arith.constant dense<0.000000e+00> : vector<16x64xf32>
    %116 = tpu.matmul %111, %112, %cst_53 {dimension_numbers = #tpu.dot_dimension_numbers<[1], [0], [0], [1], [0, 0, 1, 1], [], []>} : vector<16x32xf32>, vector<32x64xf32>, vector<16x64xf32> -> vector<16x64xf32>
    %117 = vector.broadcast %113 : vector<1x64xf32> to vector<16x64xf32>
    %118 = arith.addf %116, %117 : vector<16x64xf32>
    %cst_54 = arith.constant 0.000000e+00 : f32
    %119 = vector.broadcast %cst_54 : f32 to vector<16x64xf32>
    %120 = arith.maximumf %118, %119 : vector<16x64xf32>
    %cst_55 = arith.constant dense<0.000000e+00> : vector<16x32xf32>
    %121 = tpu.matmul %120, %114, %cst_55 {dimension_numbers = #tpu.dot_dimension_numbers<[1], [0], [0], [1], [0, 0, 1, 1], [], []>} : vector<16x64xf32>, vector<64x32xf32>, vector<16x32xf32> -> vector<16x32xf32>
    %122 = vector.broadcast %115 : vector<1x32xf32> to vector<16x32xf32>
    %123 = arith.addf %121, %122 : vector<16x32xf32>
    %124 = arith.addf %111, %123 : vector<16x32xf32>
    %c0_56 = arith.constant 0 : index
    %c0_57 = arith.constant 0 : index
    %125 = vector.load %arg13[%c0_56, %c0_57] : memref<1x32xf32, #tpu.memory_space<vmem>>, vector<1x32xf32>
    %c0_58 = arith.constant 0 : index
    %c0_59 = arith.constant 0 : index
    %126 = vector.load %arg14[%c0_58, %c0_59] : memref<1x32xf32, #tpu.memory_space<vmem>>, vector<1x32xf32>
    %cst_60 = arith.constant dense<0.000000e+00> : vector<16xf32>
    %127 = vector.multi_reduction <add>, %124, %cst_60 [1] : vector<16x32xf32> to vector<16xf32>
    %128 = vector.shape_cast %127 : vector<16xf32> to vector<16x1xf32>
    %cst_61 = arith.constant 3.200000e+01 : f32
    %129 = vector.broadcast %cst_61 : f32 to vector<16x1xf32>
    %130 = arith.divf %128, %129 : vector<16x1xf32>
    %131 = vector.broadcast %130 : vector<16x1xf32> to vector<16x32xf32>
    %132 = arith.subf %124, %131 : vector<16x32xf32>
    %133 = arith.mulf %132, %132 : vector<16x32xf32>
    %cst_62 = arith.constant dense<0.000000e+00> : vector<16xf32>
    %134 = vector.multi_reduction <add>, %133, %cst_62 [1] : vector<16x32xf32> to vector<16xf32>
    %135 = vector.shape_cast %134 : vector<16xf32> to vector<16x1xf32>
    %cst_63 = arith.constant 3.200000e+01 : f32
    %136 = vector.broadcast %cst_63 : f32 to vector<16x1xf32>
    %137 = arith.divf %135, %136 : vector<16x1xf32>
    %cst_64 = arith.constant 9.99999974E-6 : f32
    %138 = vector.broadcast %cst_64 : f32 to vector<16x1xf32>
    %139 = arith.addf %137, %138 : vector<16x1xf32>
    %140 = math.rsqrt %139 : vector<16x1xf32>
    %141 = vector.broadcast %140 : vector<16x1xf32> to vector<16x32xf32>
    %142 = arith.mulf %132, %141 : vector<16x32xf32>
    %143 = vector.broadcast %125 : vector<1x32xf32> to vector<16x32xf32>
    %144 = arith.mulf %142, %143 : vector<16x32xf32>
    %145 = vector.broadcast %126 : vector<1x32xf32> to vector<16x32xf32>
    %146 = arith.addf %144, %145 : vector<16x32xf32>
    %c0_65 = arith.constant 0 : index
    %c0_66 = arith.constant 0 : index
    %147 = vector.load %arg15[%c0_65, %c0_66] : memref<32x24xf32, #tpu.memory_space<vmem>>, vector<32x24xf32>
    %c0_67 = arith.constant 0 : index
    %c0_68 = arith.constant 0 : index
    %148 = vector.load %arg16[%c0_67, %c0_68] : memref<1x24xf32, #tpu.memory_space<vmem>>, vector<1x24xf32>
    %c0_69 = arith.constant 0 : index
    %c0_70 = arith.constant 0 : index
    %149 = vector.load %arg17[%c0_69, %c0_70] : memref<24x16xf32, #tpu.memory_space<vmem>>, vector<24x16xf32>
    %c0_71 = arith.constant 0 : index
    %c0_72 = arith.constant 0 : index
    %150 = vector.load %arg18[%c0_71, %c0_72] : memref<1x16xf32, #tpu.memory_space<vmem>>, vector<1x16xf32>
    %cst_73 = arith.constant dense<0.000000e+00> : vector<16x24xf32>
    %151 = tpu.matmul %146, %147, %cst_73 {dimension_numbers = #tpu.dot_dimension_numbers<[1], [0], [0], [1], [0, 0, 1, 1], [], []>} : vector<16x32xf32>, vector<32x24xf32>, vector<16x24xf32> -> vector<16x24xf32>
    %152 = vector.broadcast %148 : vector<1x24xf32> to vector<16x24xf32>
    %153 = arith.addf %151, %152 : vector<16x24xf32>
    %cst_74 = arith.constant 0.000000e+00 : f32
    %154 = vector.broadcast %cst_74 : f32 to vector<16x24xf32>
    %155 = arith.maximumf %153, %154 : vector<16x24xf32>
    %cst_75 = arith.constant dense<0.000000e+00> : vector<16x16xf32>
    %156 = tpu.matmul %155, %149, %cst_75 {dimension_numbers = #tpu.dot_dimension_numbers<[1], [0], [0], [1], [0, 0, 1, 1], [], []>} : vector<16x24xf32>, vector<24x16xf32>, vector<16x16xf32> -> vector<16x16xf32>
    %157 = vector.broadcast %150 : vector<1x16xf32> to vector<16x16xf32>
    %158 = arith.addf %156, %157 : vector<16x16xf32>
    %c0_76 = arith.constant 0 : index
    %c0_77 = arith.constant 0 : index
    %159 = vector.load %arg19[%c0_76, %c0_77] : memref<16x32xf32, #tpu.memory_space<vmem>>, vector<16x32xf32>
    tpu.vector_store %arg19[%c0_76, %c0_77], %123 {strides = array<i32>} : memref<16x32xf32, #tpu.memory_space<vmem>>, vector<16x32xf32>,
    %c0_78 = arith.constant 0 : index
    %c0_79 = arith.constant 0 : index
    %160 = vector.load %arg20[%c0_78, %c0_79] : memref<16x16xf32, #tpu.memory_space<vmem>>, vector<16x16xf32>
    tpu.vector_store %arg20[%c0_78, %c0_79], %158 {strides = array<i32>} : memref<16x16xf32, #tpu.memory_space<vmem>>, vector<16x16xf32>,
    return
  }
  func.func @transform_0(%arg0: i32) -> (i32, i32) {
    %c0_i32 = arith.constant 0 : i32
    %c0_i32_0 = arith.constant 0 : i32
    %c0_i32_1 = arith.constant 0 : i32
    return %c0_i32, %c0_i32_0 : i32, i32
  }
  func.func @transform_1(%arg0: i32) -> (i32, i32) {
    %c0_i32 = arith.constant 0 : i32
    %c0_i32_0 = arith.constant 0 : i32
    %c0_i32_1 = arith.constant 0 : i32
    return %c0_i32, %c0_i32_0 : i32, i32
  }
  func.func @transform_2(%arg0: i32) -> (i32, i32) {
    %c0_i32 = arith.constant 0 : i32
    %c0_i32_0 = arith.constant 0 : i32
    %c0_i32_1 = arith.constant 0 : i32
    return %c0_i32, %c0_i32_0 : i32, i32
  }
  func.func @transform_3(%arg0: i32) -> (i32, i32) {
    %c0_i32 = arith.constant 0 : i32
    %c0_i32_0 = arith.constant 0 : i32
    %c0_i32_1 = arith.constant 0 : i32
    return %c0_i32, %c0_i32_0 : i32, i32
  }
  func.func @transform_4(%arg0: i32) -> (i32, i32) {
    %c0_i32 = arith.constant 0 : i32
    %c0_i32_0 = arith.constant 0 : i32
    %c0_i32_1 = arith.constant 0 : i32
    return %c0_i32, %c0_i32_0 : i32, i32
  }
  func.func @transform_5(%arg0: i32) -> (i32, i32) {
    %c0_i32 = arith.constant 0 : i32
    %c0_i32_0 = arith.constant 0 : i32
    %c0_i32_1 = arith.constant 0 : i32
    return %c0_i32, %c0_i32_0 : i32, i32
  }
  func.func @transform_6(%arg0: i32) -> (i32, i32) {
    %c0_i32 = arith.constant 0 : i32
    %c0_i32_0 = arith.constant 0 : i32
    %c0_i32_1 = arith.constant 0 : i32
    return %c0_i32, %c0_i32_0 : i32, i32
  }
  func.func @transform_7(%arg0: i32) -> (i32, i32) {
    %c0_i32 = arith.constant 0 : i32
    %c0_i32_0 = arith.constant 0 : i32
    %c0_i32_1 = arith.constant 0 : i32
    return %c0_i32, %c0_i32_0 : i32, i32
  }
  func.func @transform_8(%arg0: i32) -> (i32, i32) {
    %c0_i32 = arith.constant 0 : i32
    %c0_i32_0 = arith.constant 0 : i32
    %c0_i32_1 = arith.constant 0 : i32
    return %c0_i32, %c0_i32_0 : i32, i32
  }
  func.func @transform_9(%arg0: i32) -> (i32, i32) {
    %c0_i32 = arith.constant 0 : i32
    %c0_i32_0 = arith.constant 0 : i32
    %c0_i32_1 = arith.constant 0 : i32
    return %c0_i32, %c0_i32_0 : i32, i32
  }
  func.func @transform_10(%arg0: i32) -> (i32, i32) {
    %c0_i32 = arith.constant 0 : i32
    %c0_i32_0 = arith.constant 0 : i32
    %c0_i32_1 = arith.constant 0 : i32
    return %c0_i32, %c0_i32_0 : i32, i32
  }
  func.func @transform_11(%arg0: i32) -> (i32, i32) {
    %c0_i32 = arith.constant 0 : i32
    %c0_i32_0 = arith.constant 0 : i32
    %c0_i32_1 = arith.constant 0 : i32
    return %c0_i32, %c0_i32_0 : i32, i32
  }
  func.func @transform_12(%arg0: i32) -> (i32, i32) {
    %c0_i32 = arith.constant 0 : i32
    %c0_i32_0 = arith.constant 0 : i32
    %c0_i32_1 = arith.constant 0 : i32
    return %c0_i32, %c0_i32_0 : i32, i32
  }
  func.func @transform_13(%arg0: i32) -> (i32, i32) {
    %c0_i32 = arith.constant 0 : i32
    %c0_i32_0 = arith.constant 0 : i32
    %c0_i32_1 = arith.constant 0 : i32
    return %c0_i32, %c0_i32_0 : i32, i32
  }
  func.func @transform_14(%arg0: i32) -> (i32, i32) {
    %c0_i32 = arith.constant 0 : i32
    %c0_i32_0 = arith.constant 0 : i32
    %c0_i32_1 = arith.constant 0 : i32
    return %c0_i32, %c0_i32_0 : i32, i32
  }
  func.func @transform_15(%arg0: i32) -> (i32, i32) {
    %c0_i32 = arith.constant 0 : i32
    %c0_i32_0 = arith.constant 0 : i32
    %c0_i32_1 = arith.constant 0 : i32
    return %c0_i32, %c0_i32_0 : i32, i32
  }
  func.func @transform_16(%arg0: i32) -> (i32, i32) {
    %c0_i32 = arith.constant 0 : i32
    %c0_i32_0 = arith.constant 0 : i32
    %c0_i32_1 = arith.constant 0 : i32
    return %c0_i32, %c0_i32_0 : i32, i32
  }
  func.func @transform_17(%arg0: i32) -> (i32, i32) {
    %c0_i32 = arith.constant 0 : i32
    %c0_i32_0 = arith.constant 0 : i32
    %c0_i32_1 = arith.constant 0 : i32
    return %c0_i32, %c0_i32_0 : i32, i32
  }
  func.func @transform_18(%arg0: i32) -> (i32, i32) {
    %c0_i32 = arith.constant 0 : i32
    %c0_i32_0 = arith.constant 0 : i32
    %c0_i32_1 = arith.constant 0 : i32
    return %c0_i32, %c0_i32_0 : i32, i32
  }
  func.func @transform_19(%arg0: i32) -> (i32, i32) {
    %c0_i32 = arith.constant 0 : i32
    %c0_i32_0 = arith.constant 0 : i32
    %c0_i32_1 = arith.constant 0 : i32
    return %c0_i32, %c0_i32_0 : i32, i32
  }
}

</mosaic_0001>

<llo_original>
// kernel: tpu_custom_call.1
$region0: #{tpu_custom_call.1}
  #allocation0 [shape = 'u32[]', space=smem, size = 0x4, offset = 0x4, fixed_abs, tag = 'smem constant byte address 0x4 - core index']
  #allocation1 [shape = 'u32[144,128]{1,0:T(1,128)}', space=vmem, size = 0x12000, scoped, tag = 'internal scratch']
  %s0 = inlined_call_operand.vmem [shape: f32[16,32], index: 0, kind: input, shape index: {}]
  %s1 = inlined_call_operand.vmem [shape: f32[16,32], index: 1, kind: input, shape index: {}]
  %s2 = inlined_call_operand.vmem [shape: f32[32,96], index: 2, kind: input, shape index: {}]
  %s3 = inlined_call_operand.vmem [shape: f32[1,96], index: 3, kind: input, shape index: {}]
  %s4 = inlined_call_operand.vmem [shape: f32[32,32], index: 4, kind: input, shape index: {}]
  %s5 = inlined_call_operand.vmem [shape: f32[1,32], index: 5, kind: input, shape index: {}]
  %s6 = inlined_call_operand.vmem [shape: f32[1,32], index: 6, kind: input, shape index: {}]
  %s7 = inlined_call_operand.vmem [shape: f32[1,32], index: 7, kind: input, shape index: {}]
  %s8 = inlined_call_operand.vmem [shape: f32[32,64], index: 8, kind: input, shape index: {}]
  %s9 = inlined_call_operand.vmem [shape: f32[1,64], index: 9, kind: input, shape index: {}]
  %s10 = inlined_call_operand.vmem [shape: f32[64,32], index: 10, kind: input, shape index: {}]
  %s11 = inlined_call_operand.vmem [shape: f32[1,32], index: 11, kind: input, shape index: {}]
  %s12 = inlined_call_operand.vmem [shape: f32[1,32], index: 12, kind: input, shape index: {}]
  %s13 = inlined_call_operand.vmem [shape: f32[1,32], index: 13, kind: input, shape index: {}]
  %s14 = inlined_call_operand.vmem [shape: f32[32,24], index: 14, kind: input, shape index: {}]
  %s15 = inlined_call_operand.vmem [shape: f32[1,24], index: 15, kind: input, shape index: {}]
  %s16 = inlined_call_operand.vmem [shape: f32[24,16], index: 16, kind: input, shape index: {}]
  %s17 = inlined_call_operand.vmem [shape: f32[1,16], index: 17, kind: input, shape index: {}]
  %s18 = inlined_call_operand.hbm [shape: f32[16,32], index: 18, kind: output, shape index: {0}]
  %s19 = inlined_call_operand.hbm [shape: f32[16,16], index: 19, kind: output, shape index: {1}]
  %20 = xla_tuple %s18, %s19
  %s21 = sld [smem:[#allocation0]]
  $region90: #{tpu_custom_call.1} parent=0
    _
  %s23 = ssub.s32 1, %s21
  %s24 = scalar_select 0, %s23, %s21
  $region1: #{tpu_custom_call.1} parent=0
    #allocation2 [shape = 'u8[8192]{0}', space=vmem, size = 0x2000, scoped, tag = 'output window, operand 0, single buffered']
    #allocation3 [shape = 's32[1]{0}', space=sflag, size = 0x4, scoped, tag = 'scoped memory for tpu_custom_call.1']
    #allocation4 [shape = 'u8[8192]{0}', space=vmem, size = 0x2000, scoped, tag = 'output window, operand 1, single buffered']
    #allocation5 [shape = 's32[1]{0}', space=sflag, size = 0x4, scoped, tag = 'scoped memory for tpu_custom_call.1']
    %25 = vsyncpa [#allocation3], 0
    %26 = vsyncpa [#allocation5], 0
    // Predicated region
    $region2: #{tpu_custom_call.1} parent=1 // pred_check
      _
    $region3: #{tpu_custom_call.1} parent=1 // pred_check_branch
      %28 = sbr.rel (0) target = $region5
    $region4: #{tpu_custom_call.1} parent=1 // pred_region
      _
    $region5: #{tpu_custom_call.1} parent=1 // pred_fallthru
      _
    // Predicated region
    $region6: #{tpu_custom_call.1} parent=1 // pred_check
      _
    $region7: #{tpu_custom_call.1} parent=1 // pred_check_branch
      %30 = sbr.rel (0) target = $region9
    $region8: #{tpu_custom_call.1} parent=1 // pred_region
      _
    $region9: #{tpu_custom_call.1} parent=1 // pred_fallthru
      _
    // Predicated region
    $region10: #{tpu_custom_call.1} parent=1 // pred_check
      _
    $region11: #{tpu_custom_call.1} parent=1 // pred_check_branch
      %32 = sbr.rel (0) target = $region13
    $region12: #{tpu_custom_call.1} parent=1 // pred_region
      _
    $region13: #{tpu_custom_call.1} parent=1 // pred_fallthru
      _
    // Predicated region
    $region14: #{tpu_custom_call.1} parent=1 // pred_check
      _
    $region15: #{tpu_custom_call.1} parent=1 // pred_check_branch
      %34 = sbr.rel (0) target = $region17
    $region16: #{tpu_custom_call.1} parent=1 // pred_region
      _
    $region17: #{tpu_custom_call.1} parent=1 // pred_fallthru
      _
    // Predicated region
    $region18: #{tpu_custom_call.1} parent=1 // pred_check
      _
    $region19: #{tpu_custom_call.1} parent=1 // pred_check_branch
      %36 = sbr.rel (0) target = $region21
    $region20: #{tpu_custom_call.1} parent=1 // pred_region
      _
    $region21: #{tpu_custom_call.1} parent=1 // pred_fallthru
      _
    // Predicated region
    $region22: #{tpu_custom_call.1} parent=1 // pred_check
      _
    $region23: #{tpu_custom_call.1} parent=1 // pred_check_branch
      %38 = sbr.rel (0) target = $region25
    $region24: #{tpu_custom_call.1} parent=1 // pred_region
      _
    $region25: #{tpu_custom_call.1} parent=1 // pred_fallthru
      _
    // Predicated region
    $region26: #{tpu_custom_call.1} parent=1 // pred_check
      _
    $region27: #{tpu_custom_call.1} parent=1 // pred_check_branch
      %40 = sbr.rel (0) target = $region29
    $region28: #{tpu_custom_call.1} parent=1 // pred_region
      _
    $region29: #{tpu_custom_call.1} parent=1 // pred_fallthru
      _
    // Predicated region
    $region30: #{tpu_custom_call.1} parent=1 // pred_check
      _
    $region31: #{tpu_custom_call.1} parent=1 // pred_check_branch
      %42 = sbr.rel (0) target = $region33
    $region32: #{tpu_custom_call.1} parent=1 // pred_region
      _
    $region33: #{tpu_custom_call.1} parent=1 // pred_fallthru
      _
    // Predicated region
    $region34: #{tpu_custom_call.1} parent=1 // pred_check
      _
    $region35: #{tpu_custom_call.1} parent=1 // pred_check_branch
      %44 = sbr.rel (0) target = $region37
    $region36: #{tpu_custom_call.1} parent=1 // pred_region
      _
    $region37: #{tpu_custom_call.1} parent=1 // pred_fallthru
      _
    // Predicated region
    $region38: #{tpu_custom_call.1} parent=1 // pred_check
      _
    $region39: #{tpu_custom_call.1} parent=1 // pred_check_branch
      %46 = sbr.rel (0) target = $region41
    $region40: #{tpu_custom_call.1} parent=1 // pred_region
      _
    $region41: #{tpu_custom_call.1} parent=1 // pred_fallthru
      _
    // Predicated region
    $region42: #{tpu_custom_call.1} parent=1 // pred_check
      _
    $region43: #{tpu_custom_call.1} parent=1 // pred_check_branch
      %48 = sbr.rel (0) target = $region45
    $region44: #{tpu_custom_call.1} parent=1 // pred_region
      _
    $region45: #{tpu_custom_call.1} parent=1 // pred_fallthru
      _
    // Predicated region
    $region46: #{tpu_custom_call.1} parent=1 // pred_check
      _
    $region47: #{tpu_custom_call.1} parent=1 // pred_check_branch
      %50 = sbr.rel (0) target = $region49
    $region48: #{tpu_custom_call.1} parent=1 // pred_region
      _
    $region49: #{tpu_custom_call.1} parent=1 // pred_fallthru
      _
    // Predicated region
    $region50: #{tpu_custom_call.1} parent=1 // pred_check
      _
    $region51: #{tpu_custom_call.1} parent=1 // pred_check_branch
      %52 = sbr.rel (0) target = $region53
    $region52: #{tpu_custom_call.1} parent=1 // pred_region
      _
    $region53: #{tpu_custom_call.1} parent=1 // pred_fallthru
      _
    // Predicated region
    $region54: #{tpu_custom_call.1} parent=1 // pred_check
      _
    $region55: #{tpu_custom_call.1} parent=1 // pred_check_branch
      %54 = sbr.rel (0) target = $region57
    $region56: #{tpu_custom_call.1} parent=1 // pred_region
      _
    $region57: #{tpu_custom_call.1} parent=1 // pred_fallthru
      _
    // Predicated region
    $region58: #{tpu_custom_call.1} parent=1 // pred_check
      _
    $region59: #{tpu_custom_call.1} parent=1 // pred_check_branch
      %56 = sbr.rel (0) target = $region61
    $region60: #{tpu_custom_call.1} parent=1 // pred_region
      _
    $region61: #{tpu_custom_call.1} parent=1 // pred_fallthru
      _
    // Predicated region
    $region62: #{tpu_custom_call.1} parent=1 // pred_check
      _
    $region63: #{tpu_custom_call.1} parent=1 // pred_check_branch
      %58 = sbr.rel (0) target = $region65
    $region64: #{tpu_custom_call.1} parent=1 // pred_region
      _
    $region65: #{tpu_custom_call.1} parent=1 // pred_fallthru
      _
    // Predicated region
    $region66: #{tpu_custom_call.1} parent=1 // pred_check
      _
    $region67: #{tpu_custom_call.1} parent=1 // pred_check_branch
      %60 = sbr.rel (0) target = $region69
    $region68: #{tpu_custom_call.1} parent=1 // pred_region
      _
    $region69: #{tpu_custom_call.1} parent=1 // pred_fallthru
      _
    // Predicated region
    $region70: #{tpu_custom_call.1} parent=1 // pred_check
      _
    $region71: #{tpu_custom_call.1} parent=1 // pred_check_branch
      %62 = sbr.rel (0) target = $region73
    $region72: #{tpu_custom_call.1} parent=1 // pred_region
      _
    $region73: #{tpu_custom_call.1} parent=1 // pred_fallthru
      _
    %v63 = vld [vmem:[%s0] sm:$0xff]
    %v64 = vld [vmem:[%s0 + $0x8] sm:$0xff]
    %v65 = vld [vmem:[%s1] sm:$0xff]
    %v66 = vld [vmem:[%s1 + $0x8] sm:$0xff]
    %v67 = vadd.f32 %v63, %v65
    %v68 = vadd.f32 %v64, %v66
    %v69 = vld [vmem:[%s2] sm:$0xff]
    %v70 = vld [vmem:[%s2 + $0x8] sm:$0xff]
    %v71 = vld [vmem:[%s2 + $0x10] sm:$0xff]
    %v72 = vld [vmem:[%s2 + $0x18] sm:$0xff]
    %v73 = vld [vmem:[%s3] sm:$0x1]
    %v74 = vld [vmem:[%s4] sm:$0xff]
    %v75 = vld [vmem:[%s4 + $0x8] sm:$0xff]
    %v76 = vld [vmem:[%s4 + $0x10] sm:$0xff]
    %v77 = vld [vmem:[%s4 + $0x18] sm:$0xff]
    %v78 = vld [vmem:[%s5] sm:$0x1]
    %v80 = vlaneseq
    %v81 = vshrl.u32 %v80, 7
    %v82 = vsub.s32 0, %v81
    %v83 = vrot.slane %v73, %v82
    %vm85 = vcmask 261120
    %v87 = vsel %vm85, %v67, 0
    %v90 = vsel %vm85, %v68, 0
    %92 = vmatprep.subr.mxu0 0.0
    %93 = vmatpush1.msra.mxu0 %v69
    %94 = vmatprep.subr.mxu0 0.0
    %95 = vmatpush1.msra.mxu0 %v70
    %96 = vmatprep.subr.mxu0 0.0
    %97 = vmatpush1.msra.mxu0 %v71
    %98 = vmatprep.subr.mxu0 0.0
    %99 = vmatpush1.msra.mxu0 %v72
    %100 = vmatprep.subr.mxu0 0.0
    %101 = vmatpush1.msra.mxu0 0.0
    %102 = vmatprep.subr.mxu0 0.0
    %103 = vmatpush1.msra.mxu0 0.0
    %104 = vmatprep.subr.mxu0 0.0
    %105 = vmatpush1.msra.mxu0 0.0
    %106 = vmatprep.subr.mxu0 0.0
    %107 = vmatpush1.msra.mxu0 0.0
    %108 = vmatprep.subr.mxu0 0.0
    %109 = vmatpush1.msra.mxu0 0.0
    %110 = vmatprep.subr.mxu0 0.0
    %111 = vmatpush1.msra.mxu0 0.0
    %112 = vmatprep.subr.mxu0 0.0
    %113 = vmatpush1.msra.mxu0 0.0
    %114 = vmatprep.subr.mxu0 0.0
    %115 = vmatpush1.msra.mxu0 0.0
    %116 = vmatprep.subr.mxu0 0.0
    %117 = vmatpush1.msra.mxu0 0.0
    %118 = vmatprep.subr.mxu0 0.0
    %119 = vmatpush1.msra.mxu0 0.0
    %120 = vmatprep.subr.mxu0 0.0
    %121 = vmatpush1.msra.mxu0 0.0
    %122 = vmatprep.subr.mxu0 0.0
    %123 = vmatpush1.msra.mxu0 0.0
    %124 = vmatprep.subr.mxu0 0.0
    %125 = vmatpush1.msra.mxu0 0.0
    %126 = vmatprep.subr.mxu0 0.0
    %127 = vmatpush1.msra.mxu0 0.0
    %128 = vmatprep.subr.mxu0 0.0
    %129 = vmatpush1.msra.mxu0 0.0
    %130 = vmatprep.subr.mxu0 0.0
    %131 = vmatpush1.msra.mxu0 0.0
    %132 = vmatprep.subr.mxu0 0.0
    %133 = vmatpush1.msra.mxu0 0.0
    %134 = vmatprep.subr.mxu0 0.0
    %135 = vmatpush1.msra.mxu0 0.0
    %136 = vmatprep.subr.mxu0 0.0
    %137 = vmatpush1.msra.mxu0 0.0
    %138 = vmatprep.subr.mxu0 0.0
    %139 = vmatpush1.msra.mxu0 0.0
    %140 = vmatprep.subr.mxu0 0.0
    %141 = vmatpush1.msra.mxu0 0.0
    %142 = vmatprep.subr.mxu0 0.0
    %143 = vmatpush1.msra.mxu0 0.0
    %144 = vmatprep.subr.mxu0 0.0
    %145 = vmatpush1.msra.mxu0 0.0
    %146 = vmatprep.subr.mxu0 0.0
    %147 = vmatpush1.msra.mxu0 0.0
    %148 = vmatprep.subr.mxu0 0.0
    %149 = vmatpush1.msra.mxu0 0.0
    %150 = vmatprep.subr.mxu0 0.0
    %151 = vmatpush1.msra.mxu0 0.0
    %152 = vmatprep.subr.mxu0 0.0
    %153 = vmatpush1.msra.mxu0 0.0
    %154 = vmatprep.subr.mxu0 0.0
    %155 = vmatpush1.msra.mxu0 0.0
    %156 = vmatprep.mubr.f32.mxu0 0.0
    %157 = vmatmul.mubr.f32.gmra.mrb[0].mxu0 %v87
    %v158 = vpop.f32.mrb[0].mxu0
    %v159 = vadd.f32 %v83, %v158
    %v160 = vpop.f32.mrb[0].mxu0
    %161 = vmatprep.mubr.f32.mxu0 0.0
    %162 = vmatmul.mubr.f32.gmra.mrb[0].mxu0 %v90
    %v163 = vpop.f32.mrb[0].mxu0
    %v164 = vadd.f32 %v83, %v163
    %v165 = vpop.f32.mrb[0].mxu0
    %166 = vdwg.mxu0
    %169 = vrot.lane.b32.xlu0 %v159, 96
    %v170 = vpop.permute.xlu0 %169
    %171 = vrot.lane.b32.xlu0 %v164, 96
    %v172 = vpop.permute.xlu0 %171
    %vm173 = vcmask 64512
    %v174 = vsel %vm173, %v159, 0
    %v176 = vsel %vm173, %v164, 0
    %v178 = vsel %vm173, %v170, 0
    %v180 = vsel %vm173, %v172, 0
    %182 = vmatprep.subr.mxu0 0.0
    %183 = vmatpush1.xpose.msra.mxu0 %v178
    %184 = vmatprep.subr.mxu0 0.0
    %185 = vmatpush1.xpose.msra.mxu0 %v180
    %186 = vmatprep.subr.mxu0 0.0
    %187 = vmatpush1.xpose.msra.mxu0 0.0
    %188 = vmatprep.subr.mxu0 0.0
    %189 = vmatpush1.xpose.msra.mxu0 0.0
    %190 = vmatprep.subr.mxu0 0.0
    %191 = vmatpush1.xpose.msra.mxu0 0.0
    %192 = vmatprep.subr.mxu0 0.0
    %193 = vmatpush1.xpose.msra.mxu0 0.0
    %194 = vmatprep.subr.mxu0 0.0
    %195 = vmatpush1.xpose.msra.mxu0 0.0
    %196 = vmatprep.subr.mxu0 0.0
    %197 = vmatpush1.xpose.msra.mxu0 0.0
    %198 = vmatprep.subr.mxu0 0.0
    %199 = vmatpush1.xpose.msra.mxu0 0.0
    %200 = vmatprep.subr.mxu0 0.0
    %201 = vmatpush1.xpose.msra.mxu0 0.0
    %202 = vmatprep.subr.mxu0 0.0
    %203 = vmatpush1.xpose.msra.mxu0 0.0
    %204 = vmatprep.subr.mxu0 0.0
    %205 = vmatpush1.xpose.msra.mxu0 0.0
    %206 = vmatprep.subr.mxu0 0.0
    %207 = vmatpush1.xpose.msra.mxu0 0.0
    %208 = vmatprep.subr.mxu0 0.0
    %209 = vmatpush1.xpose.msra.mxu0 0.0
    %210 = vmatprep.subr.mxu0 0.0
    %211 = vmatpush1.xpose.msra.mxu0 0.0
    %212 = vmatprep.subr.mxu0 0.0
    %213 = vmatpush1.xpose.msra.mxu0 0.0
    %214 = vmatprep.subr.mxu0 0.0
    %215 = vmatpush1.xpose.msra.mxu0 0.0
    %216 = vmatprep.subr.mxu0 0.0
    %217 = vmatpush1.xpose.msra.mxu0 0.0
    %218 = vmatprep.subr.mxu0 0.0
    %219 = vmatpush1.xpose.msra.mxu0 0.0
    %220 = vmatprep.subr.mxu0 0.0
    %221 = vmatpush1.xpose.msra.mxu0 0.0
    %222 = vmatprep.subr.mxu0 0.0
    %223 = vmatpush1.xpose.msra.mxu0 0.0
    %224 = vmatprep.subr.mxu0 0.0
    %225 = vmatpush1.xpose.msra.mxu0 0.0
    %226 = vmatprep.subr.mxu0 0.0
    %227 = vmatpush1.xpose.msra.mxu0 0.0
    %228 = vmatprep.subr.mxu0 0.0
    %229 = vmatpush1.xpose.msra.mxu0 0.0
    %230 = vmatprep.subr.mxu0 0.0
    %231 = vmatpush1.xpose.msra.mxu0 0.0
    %232 = vmatprep.subr.mxu0 0.0
    %233 = vmatpush1.xpose.msra.mxu0 0.0
    %234 = vmatprep.subr.mxu0 0.0
    %235 = vmatpush1.xpose.msra.mxu0 0.0
    %236 = vmatprep.subr.mxu0 0.0
    %237 = vmatpush1.xpose.msra.mxu0 0.0
    %238 = vmatprep.subr.mxu0 0.0
    %239 = vmatpush1.xpose.msra.mxu0 0.0
    %240 = vmatprep.subr.mxu0 0.0
    %241 = vmatpush1.xpose.msra.mxu0 0.0
    %242 = vmatprep.subr.mxu0 0.0
    %243 = vmatpush1.xpose.msra.mxu0 0.0
    %244 = vmatprep.subr.mxu0 0.0
    %245 = vmatpush1.xpose.msra.mxu0 0.0
    %246 = vmatprep.mubr.f32.mxu0 0.0
    %247 = vmatmul.mubr.f32.gmra.mrb[0].mxu0 %v174
    %v248 = vpop.f32.mrb[0].mxu0
    %v249 = vadd.f32 0.0, %v248
    %v250 = vpop.f32.mrb[0].mxu0
    %251 = vmatprep.mubr.f32.mxu0 0.0
    %252 = vmatmul.mubr.f32.gmra.mrb[0].mxu0 %v176
    %v253 = vpop.f32.mrb[0].mxu0
    %v254 = vadd.f32 0.0, %v253
    %v255 = vpop.f32.mrb[0].mxu0
    %256 = vdwg.mxu0
    %v257 = vmul.f32 %v249, 0.35355338
    %v258 = vmul.f32 %v254, 0.35355338
    %vm259 = vcmask 130048
    %v260 = vsel %vm259, %v257, -inf
    %261 = vmax.xlane.f32.xlu0 %v260
    %v262 = vpop.xlane.xlu0 %261
    %v263 = vsel %vm259, %v258, -inf
    %264 = vmax.xlane.f32.xlu0 %v263
    %v265 = vpop.xlane.xlu0 %264
    %v266 = vsub.f32 %v257, %v262
    %v267 = vsub.f32 %v258, %v265
    %v268 = vmul.f32 %v266, 1.442695
    %v269 = vpow.pop %v268
    %v270 = vmul.f32 %v267, 1.442695
    %v271 = vpow.pop %v270
    %v272 = vsel %vm259, %v269, 0.0
    %273 = vadd.xlane.f32.xlu0 %v272
    %v274 = vpop.xlane.xlu0 %273
    %v275 = vsel %vm259, %v271, 0.0
    %276 = vadd.xlane.f32.xlu0 %v275
    %v277 = vpop.xlane.xlu0 %276
    %278 = vrot.lane.b32.xlu0 %v159, 64
    %v279 = vpop.permute.xlu0 %278
    %280 = vrot.lane.b32.xlu0 %v164, 64
    %v281 = vpop.permute.xlu0 %280
    %v285 = vsel %vm259, %v269, 0
    %v288 = vsel %vm259, %v271, 0
    %290 = vmatprep.subr.mxu0 0.0
    %291 = vmatpush1.msra.mxu0 %v279
    %292 = vmatprep.subr.mxu0 0.0
    %293 = vmatpush1.msra.mxu0 %v281
    %294 = vmatprep.subr.mxu0 0.0
    %295 = vmatpush1.msra.mxu0 0.0
    %296 = vmatprep.subr.mxu0 0.0
    %297 = vmatpush1.msra.mxu0 0.0
    %298 = vmatprep.subr.mxu0 0.0
    %299 = vmatpush1.msra.mxu0 0.0
    %300 = vmatprep.subr.mxu0 0.0
    %301 = vmatpush1.msra.mxu0 0.0
    %302 = vmatprep.subr.mxu0 0.0
    %303 = vmatpush1.msra.mxu0 0.0
    %304 = vmatprep.subr.mxu0 0.0
    %305 = vmatpush1.msra.mxu0 0.0
    %306 = vmatprep.subr.mxu0 0.0
    %307 = vmatpush1.msra.mxu0 0.0
    %308 = vmatprep.subr.mxu0 0.0
    %309 = vmatpush1.msra.mxu0 0.0
    %310 = vmatprep.subr.mxu0 0.0
    %311 = vmatpush1.msra.mxu0 0.0
    %312 = vmatprep.subr.mxu0 0.0
    %313 = vmatpush1.msra.mxu0 0.0
    %314 = vmatprep.subr.mxu0 0.0
    %315 = vmatpush1.msra.mxu0 0.0
    %316 = vmatprep.subr.mxu0 0.0
    %317 = vmatpush1.msra.mxu0 0.0
    %318 = vmatprep.subr.mxu0 0.0
    %319 = vmatpush1.msra.mxu0 0.0
    %320 = vmatprep.subr.mxu0 0.0
    %321 = vmatpush1.msra.mxu0 0.0
    %322 = vmatprep.subr.mxu0 0.0
    %323 = vmatpush1.msra.mxu0 0.0
    %324 = vmatprep.subr.mxu0 0.0
    %325 = vmatpush1.msra.mxu0 0.0
    %326 = vmatprep.subr.mxu0 0.0
    %327 = vmatpush1.msra.mxu0 0.0
    %328 = vmatprep.subr.mxu0 0.0
    %329 = vmatpush1.msra.mxu0 0.0
    %330 = vmatprep.subr.mxu0 0.0
    %331 = vmatpush1.msra.mxu0 0.0
    %332 = vmatprep.subr.mxu0 0.0
    %333 = vmatpush1.msra.mxu0 0.0
    %334 = vmatprep.subr.mxu0 0.0
    %335 = vmatpush1.msra.mxu0 0.0
    %336 = vmatprep.subr.mxu0 0.0
    %337 = vmatpush1.msra.mxu0 0.0
    %338 = vmatprep.subr.mxu0 0.0
    %339 = vmatpush1.msra.mxu0 0.0
    %340 = vmatprep.subr.mxu0 0.0
    %341 = vmatpush1.msra.mxu0 0.0
    %342 = vmatprep.subr.mxu0 0.0
    %343 = vmatpush1.msra.mxu0 0.0
    %344 = vmatprep.subr.mxu0 0.0
    %345 = vmatpush1.msra.mxu0 0.0
    %346 = vmatprep.subr.mxu0 0.0
    %347 = vmatpush1.msra.mxu0 0.0
    %348 = vmatprep.subr.mxu0 0.0
    %349 = vmatpush1.msra.mxu0 0.0
    %350 = vmatprep.subr.mxu0 0.0
    %351 = vmatpush1.msra.mxu0 0.0
    %352 = vmatprep.subr.mxu0 0.0
    %353 = vmatpush1.msra.mxu0 0.0
    %354 = vmatprep.mubr.f32.mxu0 0.0
    %355 = vmatmul.mubr.f32.gmra.mrb[0].mxu0 %v285
    %v356 = vpop.f32.mrb[0].mxu0
    %v357 = vadd.f32 0.0, %v356
    %v358 = vpop.f32.mrb[0].mxu0
    %359 = vmatprep.mubr.f32.mxu0 0.0
    %360 = vmatmul.mubr.f32.gmra.mrb[0].mxu0 %v288
    %v361 = vpop.f32.mrb[0].mxu0
    %v362 = vadd.f32 0.0, %v361
    %v363 = vpop.f32.mrb[0].mxu0
    %364 = vdwg.mxu0
    %v365 = vrcp.pop %v274
    %v366 = vmul.f32 %v357, %v365
    %v367 = vrcp.pop %v277
    %v368 = vmul.f32 %v362, %v367
    %369 = vrot.lane.b32.xlu0 %v159, 120
    %v370 = vpop.permute.xlu0 %369
    %371 = vrot.lane.b32.xlu0 %v164, 120
    %v372 = vpop.permute.xlu0 %371
    %373 = vrot.lane.b32.xlu0 %v159, 88
    %v374 = vpop.permute.xlu0 %373
    %375 = vrot.lane.b32.xlu0 %v164, 88
    %v376 = vpop.permute.xlu0 %375
    %v377 = vsel %vm173, %v370, 0
    %v379 = vsel %vm173, %v372, 0
    %v381 = vsel %vm173, %v374, 0
    %v383 = vsel %vm173, %v376, 0
    %385 = vmatprep.subr.mxu0 0.0
    %386 = vmatpush1.xpose.msra.mxu0 %v381
    %387 = vmatprep.subr.mxu0 0.0
    %388 = vmatpush1.xpose.msra.mxu0 %v383
    %389 = vmatprep.subr.mxu0 0.0
    %390 = vmatpush1.xpose.msra.mxu0 0.0
    %391 = vmatprep.subr.mxu0 0.0
    %392 = vmatpush1.xpose.msra.mxu0 0.0
    %393 = vmatprep.subr.mxu0 0.0
    %394 = vmatpush1.xpose.msra.mxu0 0.0
    %395 = vmatprep.subr.mxu0 0.0
    %396 = vmatpush1.xpose.msra.mxu0 0.0
    %397 = vmatprep.subr.mxu0 0.0
    %398 = vmatpush1.xpose.msra.mxu0 0.0
    %399 = vmatprep.subr.mxu0 0.0
    %400 = vmatpush1.xpose.msra.mxu0 0.0
    %401 = vmatprep.subr.mxu0 0.0
    %402 = vmatpush1.xpose.msra.mxu0 0.0
    %403 = vmatprep.subr.mxu0 0.0
    %404 = vmatpush1.xpose.msra.mxu0 0.0
    %405 = vmatprep.subr.mxu0 0.0
    %406 = vmatpush1.xpose.msra.mxu0 0.0
    %407 = vmatprep.subr.mxu0 0.0
    %408 = vmatpush1.xpose.msra.mxu0 0.0
    %409 = vmatprep.subr.mxu0 0.0
    %410 = vmatpush1.xpose.msra.mxu0 0.0
    %411 = vmatprep.subr.mxu0 0.0
    %412 = vmatpush1.xpose.msra.mxu0 0.0
    %413 = vmatprep.subr.mxu0 0.0
    %414 = vmatpush1.xpose.msra.mxu0 0.0
    %415 = vmatprep.subr.mxu0 0.0
    %416 = vmatpush1.xpose.msra.mxu0 0.0
    %417 = vmatprep.subr.mxu0 0.0
    %418 = vmatpush1.xpose.msra.mxu0 0.0
    %419 = vmatprep.subr.mxu0 0.0
    %420 = vmatpush1.xpose.msra.mxu0 0.0
    %421 = vmatprep.subr.mxu0 0.0
    %422 = vmatpush1.xpose.msra.mxu0 0.0
    %423 = vmatprep.subr.mxu0 0.0
    %424 = vmatpush1.xpose.msra.mxu0 0.0
    %425 = vmatprep.subr.mxu0 0.0
    %426 = vmatpush1.xpose.msra.mxu0 0.0
    %427 = vmatprep.subr.mxu0 0.0
    %428 = vmatpush1.xpose.msra.mxu0 0.0
    %429 = vmatprep.subr.mxu0 0.0
    %430 = vmatpush1.xpose.msra.mxu0 0.0
    %431 = vmatprep.subr.mxu0 0.0
    %432 = vmatpush1.xpose.msra.mxu0 0.0
    %433 = vmatprep.subr.mxu0 0.0
    %434 = vmatpush1.xpose.msra.mxu0 0.0
    %435 = vmatprep.subr.mxu0 0.0
    %436 = vmatpush1.xpose.msra.mxu0 0.0
    %437 = vmatprep.subr.mxu0 0.0
    %438 = vmatpush1.xpose.msra.mxu0 0.0
    %439 = vmatprep.subr.mxu0 0.0
    %440 = vmatpush1.xpose.msra.mxu0 0.0
    %441 = vmatprep.subr.mxu0 0.0
    %442 = vmatpush1.xpose.msra.mxu0 0.0
    %443 = vmatprep.subr.mxu0 0.0
    %444 = vmatpush1.xpose.msra.mxu0 0.0
    %445 = vmatprep.subr.mxu0 0.0
    %446 = vmatpush1.xpose.msra.mxu0 0.0
    %447 = vmatprep.subr.mxu0 0.0
    %448 = vmatpush1.xpose.msra.mxu0 0.0
    %449 = vmatprep.mubr.f32.mxu0 0.0
    %450 = vmatmul.mubr.f32.gmra.mrb[0].mxu0 %v377
    %v451 = vpop.f32.mrb[0].mxu0
    %v452 = vadd.f32 0.0, %v451
    %v453 = vpop.f32.mrb[0].mxu0
    %454 = vmatprep.mubr.f32.mxu0 0.0
    %455 = vmatmul.mubr.f32.gmra.mrb[0].mxu0 %v379
    %v456 = vpop.f32.mrb[0].mxu0
    %v457 = vadd.f32 0.0, %v456
    %v458 = vpop.f32.mrb[0].mxu0
    %459 = vdwg.mxu0
    %v460 = vmul.f32 %v452, 0.35355338
    %v461 = vmul.f32 %v457, 0.35355338
    %v462 = vsel %vm259, %v460, -inf
    %463 = vmax.xlane.f32.xlu0 %v462
    %v464 = vpop.xlane.xlu0 %463
    %v465 = vsel %vm259, %v461, -inf
    %466 = vmax.xlane.f32.xlu0 %v465
    %v467 = vpop.xlane.xlu0 %466
    %v468 = vsub.f32 %v460, %v464
    %v469 = vsub.f32 %v461, %v467
    %v470 = vmul.f32 %v468, 1.442695
    %v471 = vpow.pop %v470
    %v472 = vmul.f32 %v469, 1.442695
    %v473 = vpow.pop %v472
    %v474 = vsel %vm259, %v471, 0.0
    %475 = vadd.xlane.f32.xlu0 %v474
    %v476 = vpop.xlane.xlu0 %475
    %v477 = vsel %vm259, %v473, 0.0
    %478 = vadd.xlane.f32.xlu0 %v477
    %v479 = vpop.xlane.xlu0 %478
    %480 = vrot.lane.b32.xlu0 %v159, 56
    %v481 = vpop.permute.xlu0 %480
    %482 = vrot.lane.b32.xlu0 %v164, 56
    %v483 = vpop.permute.xlu0 %482
    %v487 = vsel %vm259, %v471, 0
    %v490 = vsel %vm259, %v473, 0
    %492 = vmatprep.subr.mxu0 0.0
    %493 = vmatpush1.msra.mxu0 %v481
    %494 = vmatprep.subr.mxu0 0.0
    %495 = vmatpush1.msra.mxu0 %v483
    %496 = vmatprep.subr.mxu0 0.0
    %497 = vmatpush1.msra.mxu0 0.0
    %498 = vmatprep.subr.mxu0 0.0
    %499 = vmatpush1.msra.mxu0 0.0
    %500 = vmatprep.subr.mxu0 0.0
    %501 = vmatpush1.msra.mxu0 0.0
    %502 = vmatprep.subr.mxu0 0.0
    %503 = vmatpush1.msra.mxu0 0.0
    %504 = vmatprep.subr.mxu0 0.0
    %505 = vmatpush1.msra.mxu0 0.0
    %506 = vmatprep.subr.mxu0 0.0
    %507 = vmatpush1.msra.mxu0 0.0
    %508 = vmatprep.subr.mxu0 0.0
    %509 = vmatpush1.msra.mxu0 0.0
    %510 = vmatprep.subr.mxu0 0.0
    %511 = vmatpush1.msra.mxu0 0.0
    %512 = vmatprep.subr.mxu0 0.0
    %513 = vmatpush1.msra.mxu0 0.0
    %514 = vmatprep.subr.mxu0 0.0
    %515 = vmatpush1.msra.mxu0 0.0
    %516 = vmatprep.subr.mxu0 0.0
    %517 = vmatpush1.msra.mxu0 0.0
    %518 = vmatprep.subr.mxu0 0.0
    %519 = vmatpush1.msra.mxu0 0.0
    %520 = vmatprep.subr.mxu0 0.0
    %521 = vmatpush1.msra.mxu0 0.0
    %522 = vmatprep.subr.mxu0 0.0
    %523 = vmatpush1.msra.mxu0 0.0
    %524 = vmatprep.subr.mxu0 0.0
    %525 = vmatpush1.msra.mxu0 0.0
    %526 = vmatprep.subr.mxu0 0.0
    %527 = vmatpush1.msra.mxu0 0.0
    %528 = vmatprep.subr.mxu0 0.0
    %529 = vmatpush1.msra.mxu0 0.0
    %530 = vmatprep.subr.mxu0 0.0
    %531 = vmatpush1.msra.mxu0 0.0
    %532 = vmatprep.subr.mxu0 0.0
    %533 = vmatpush1.msra.mxu0 0.0
    %534 = vmatprep.subr.mxu0 0.0
    %535 = vmatpush1.msra.mxu0 0.0
    %536 = vmatprep.subr.mxu0 0.0
    %537 = vmatpush1.msra.mxu0 0.0
    %538 = vmatprep.subr.mxu0 0.0
    %539 = vmatpush1.msra.mxu0 0.0
    %540 = vmatprep.subr.mxu0 0.0
    %541 = vmatpush1.msra.mxu0 0.0
    %542 = vmatprep.subr.mxu0 0.0
    %543 = vmatpush1.msra.mxu0 0.0
    %544 = vmatprep.subr.mxu0 0.0
    %545 = vmatpush1.msra.mxu0 0.0
    %546 = vmatprep.subr.mxu0 0.0
    %547 = vmatpush1.msra.mxu0 0.0
    %548 = vmatprep.subr.mxu0 0.0
    %549 = vmatpush1.msra.mxu0 0.0
    %550 = vmatprep.subr.mxu0 0.0
    %551 = vmatpush1.msra.mxu0 0.0
    %552 = vmatprep.subr.mxu0 0.0
    %553 = vmatpush1.msra.mxu0 0.0
    %554 = vmatprep.subr.mxu0 0.0
    %555 = vmatpush1.msra.mxu0 0.0
    %556 = vmatprep.mubr.f32.mxu0 0.0
    %557 = vmatmul.mubr.f32.gmra.mrb[0].mxu0 %v487
    %v558 = vpop.f32.mrb[0].mxu0
    %v559 = vadd.f32 0.0, %v558
    %v560 = vpop.f32.mrb[0].mxu0
    %561 = vmatprep.mubr.f32.mxu0 0.0
    %562 = vmatmul.mubr.f32.gmra.mrb[0].mxu0 %v490
    %v563 = vpop.f32.mrb[0].mxu0
    %v564 = vadd.f32 0.0, %v563
    %v565 = vpop.f32.mrb[0].mxu0
    %566 = vdwg.mxu0
    %v567 = vrcp.pop %v476
    %v568 = vmul.f32 %v559, %v567
    %v569 = vrcp.pop %v479
    %v570 = vmul.f32 %v564, %v569
    %v572 = vsel %vm173, %v568, 0
    %v575 = vsel %vm173, %v570, 0
    %577 = vmatprep.subr.mxu0 0.0
    %578 = vmatpush1.msra.mxu0 %v75
    %579 = vmatprep.subr.mxu0 0.0
    %580 = vmatpush1.msra.mxu0 0.0
    %581 = vmatprep.subr.mxu0 0.0
    %582 = vmatpush1.msra.mxu0 0.0
    %583 = vmatprep.subr.mxu0 0.0
    %584 = vmatpush1.msra.mxu0 0.0
    %585 = vmatprep.subr.mxu0 0.0
    %586 = vmatpush1.msra.mxu0 0.0
    %587 = vmatprep.subr.mxu0 0.0
    %588 = vmatpush1.msra.mxu0 0.0
    %589 = vmatprep.subr.mxu0 0.0
    %590 = vmatpush1.msra.mxu0 0.0
    %591 = vmatprep.subr.mxu0 0.0
    %592 = vmatpush1.msra.mxu0 0.0
    %593 = vmatprep.subr.mxu0 0.0
    %594 = vmatpush1.msra.mxu0 0.0
    %595 = vmatprep.subr.mxu0 0.0
    %596 = vmatpush1.msra.mxu0 0.0
    %597 = vmatprep.subr.mxu0 0.0
    %598 = vmatpush1.msra.mxu0 0.0
    %599 = vmatprep.subr.mxu0 0.0
    %600 = vmatpush1.msra.mxu0 0.0
    %601 = vmatprep.subr.mxu0 0.0
    %602 = vmatpush1.msra.mxu0 0.0
    %603 = vmatprep.subr.mxu0 0.0
    %604 = vmatpush1.msra.mxu0 0.0
    %605 = vmatprep.subr.mxu0 0.0
    %606 = vmatpush1.msra.mxu0 0.0
    %607 = vmatprep.subr.mxu0 0.0
    %608 = vmatpush1.msra.mxu0 0.0
    %609 = vmatprep.subr.mxu0 0.0
    %610 = vmatpush1.msra.mxu0 0.0
    %611 = vmatprep.subr.mxu0 0.0
    %612 = vmatpush1.msra.mxu0 0.0
    %613 = vmatprep.subr.mxu0 0.0
    %614 = vmatpush1.msra.mxu0 0.0
    %615 = vmatprep.subr.mxu0 0.0
    %616 = vmatpush1.msra.mxu0 0.0
    %617 = vmatprep.subr.mxu0 0.0
    %618 = vmatpush1.msra.mxu0 0.0
    %619 = vmatprep.subr.mxu0 0.0
    %620 = vmatpush1.msra.mxu0 0.0
    %621 = vmatprep.subr.mxu0 0.0
    %622 = vmatpush1.msra.mxu0 0.0
    %623 = vmatprep.subr.mxu0 0.0
    %624 = vmatpush1.msra.mxu0 0.0
    %625 = vmatprep.subr.mxu0 0.0
    %626 = vmatpush1.msra.mxu0 0.0
    %627 = vmatprep.subr.mxu0 0.0
    %628 = vmatpush1.msra.mxu0 0.0
    %629 = vmatprep.subr.mxu0 0.0
    %630 = vmatpush1.msra.mxu0 0.0
    %631 = vmatprep.subr.mxu0 0.0
    %632 = vmatpush1.msra.mxu0 0.0
    %633 = vmatprep.subr.mxu0 0.0
    %634 = vmatpush1.msra.mxu0 0.0
    %635 = vmatprep.subr.mxu0 0.0
    %636 = vmatpush1.msra.mxu0 0.0
    %637 = vmatprep.subr.mxu0 0.0
    %638 = vmatpush1.msra.mxu0 0.0
    %639 = vmatprep.subr.mxu0 0.0
    %640 = vmatpush1.msra.mxu0 0.0
    %641 = vmatprep.mubr.f32.mxu0 0.0
    %642 = vmatmul.mubr.f32.gmra.mrb[0].mxu0 %v572
    %v643 = vpop.f32.mrb[0].mxu0
    %v644 = vadd.f32 0.0, %v643
    %v645 = vpop.f32.mrb[0].mxu0
    %646 = vmatprep.mubr.f32.mxu0 0.0
    %647 = vmatmul.mubr.f32.gmra.mrb[0].mxu0 %v575
    %v648 = vpop.f32.mrb[0].mxu0
    %v649 = vadd.f32 0.0, %v648
    %v650 = vpop.f32.mrb[0].mxu0
    %651 = vdwg.mxu0
    %v653 = vsel %vm173, %v366, 0
    %v656 = vsel %vm173, %v368, 0
    %658 = vmatprep.subr.mxu0 0.0
    %659 = vmatpush1.msra.mxu0 %v74
    %660 = vmatprep.subr.mxu0 0.0
    %661 = vmatpush1.msra.mxu0 0.0
    %662 = vmatprep.subr.mxu0 0.0
    %663 = vmatpush1.msra.mxu0 0.0
    %664 = vmatprep.subr.mxu0 0.0
    %665 = vmatpush1.msra.mxu0 0.0
    %666 = vmatprep.subr.mxu0 0.0
    %667 = vmatpush1.msra.mxu0 0.0
    %668 = vmatprep.subr.mxu0 0.0
    %669 = vmatpush1.msra.mxu0 0.0
    %670 = vmatprep.subr.mxu0 0.0
    %671 = vmatpush1.msra.mxu0 0.0
    %672 = vmatprep.subr.mxu0 0.0
    %673 = vmatpush1.msra.mxu0 0.0
    %674 = vmatprep.subr.mxu0 0.0
    %675 = vmatpush1.msra.mxu0 0.0
    %676 = vmatprep.subr.mxu0 0.0
    %677 = vmatpush1.msra.mxu0 0.0
    %678 = vmatprep.subr.mxu0 0.0
    %679 = vmatpush1.msra.mxu0 0.0
    %680 = vmatprep.subr.mxu0 0.0
    %681 = vmatpush1.msra.mxu0 0.0
    %682 = vmatprep.subr.mxu0 0.0
    %683 = vmatpush1.msra.mxu0 0.0
    %684 = vmatprep.subr.mxu0 0.0
    %685 = vmatpush1.msra.mxu0 0.0
    %686 = vmatprep.subr.mxu0 0.0
    %687 = vmatpush1.msra.mxu0 0.0
    %688 = vmatprep.subr.mxu0 0.0
    %689 = vmatpush1.msra.mxu0 0.0
    %690 = vmatprep.subr.mxu0 0.0
    %691 = vmatpush1.msra.mxu0 0.0
    %692 = vmatprep.subr.mxu0 0.0
    %693 = vmatpush1.msra.mxu0 0.0
    %694 = vmatprep.subr.mxu0 0.0
    %695 = vmatpush1.msra.mxu0 0.0
    %696 = vmatprep.subr.mxu0 0.0
    %697 = vmatpush1.msra.mxu0 0.0
    %698 = vmatprep.subr.mxu0 0.0
    %699 = vmatpush1.msra.mxu0 0.0
    %700 = vmatprep.subr.mxu0 0.0
    %701 = vmatpush1.msra.mxu0 0.0
    %702 = vmatprep.subr.mxu0 0.0
    %703 = vmatpush1.msra.mxu0 0.0
    %704 = vmatprep.subr.mxu0 0.0
    %705 = vmatpush1.msra.mxu0 0.0
    %706 = vmatprep.subr.mxu0 0.0
    %707 = vmatpush1.msra.mxu0 0.0
    %708 = vmatprep.subr.mxu0 0.0
    %709 = vmatpush1.msra.mxu0 0.0
    %710 = vmatprep.subr.mxu0 0.0
    %711 = vmatpush1.msra.mxu0 0.0
    %712 = vmatprep.subr.mxu0 0.0
    %713 = vmatpush1.msra.mxu0 0.0
    %714 = vmatprep.subr.mxu0 0.0
    %715 = vmatpush1.msra.mxu0 0.0
    %716 = vmatprep.subr.mxu0 0.0
    %717 = vmatpush1.msra.mxu0 0.0
    %718 = vmatprep.subr.mxu0 0.0
    %719 = vmatpush1.msra.mxu0 0.0
    %720 = vmatprep.subr.mxu0 0.0
    %721 = vmatpush1.msra.mxu0 0.0
    %722 = vmatprep.mubr.f32.mxu0 0.0
    %723 = vmatmul.mubr.f32.gmra.mrb[0].mxu0 %v653
    %v724 = vpop.f32.mrb[0].mxu0
    %v725 = vadd.f32 %v644, %v724
    %v726 = vpop.f32.mrb[0].mxu0
    %727 = vmatprep.mubr.f32.mxu0 0.0
    %728 = vmatmul.mubr.f32.gmra.mrb[0].mxu0 %v656
    %v729 = vpop.f32.mrb[0].mxu0
    %v730 = vadd.f32 %v649, %v729
    %v731 = vpop.f32.mrb[0].mxu0
    %732 = vdwg.mxu0
    %733 = vrot.lane.b32.xlu0 %v159, 112
    %v734 = vpop.permute.xlu0 %733
    %735 = vrot.lane.b32.xlu0 %v164, 112
    %v736 = vpop.permute.xlu0 %735
    %737 = vrot.lane.b32.xlu0 %v159, 80
    %v738 = vpop.permute.xlu0 %737
    %739 = vrot.lane.b32.xlu0 %v164, 80
    %v740 = vpop.permute.xlu0 %739
    %v741 = vsel %vm173, %v734, 0
    %v743 = vsel %vm173, %v736, 0
    %v745 = vsel %vm173, %v738, 0
    %v747 = vsel %vm173, %v740, 0
    %749 = vmatprep.subr.mxu0 0.0
    %750 = vmatpush1.xpose.msra.mxu0 %v745
    %751 = vmatprep.subr.mxu0 0.0
    %752 = vmatpush1.xpose.msra.mxu0 %v747
    %753 = vmatprep.subr.mxu0 0.0
    %754 = vmatpush1.xpose.msra.mxu0 0.0
    %755 = vmatprep.subr.mxu0 0.0
    %756 = vmatpush1.xpose.msra.mxu0 0.0
    %757 = vmatprep.subr.mxu0 0.0
    %758 = vmatpush1.xpose.msra.mxu0 0.0
    %759 = vmatprep.subr.mxu0 0.0
    %760 = vmatpush1.xpose.msra.mxu0 0.0
    %761 = vmatprep.subr.mxu0 0.0
    %762 = vmatpush1.xpose.msra.mxu0 0.0
    %763 = vmatprep.subr.mxu0 0.0
    %764 = vmatpush1.xpose.msra.mxu0 0.0
    %765 = vmatprep.subr.mxu0 0.0
    %766 = vmatpush1.xpose.msra.mxu0 0.0
    %767 = vmatprep.subr.mxu0 0.0
    %768 = vmatpush1.xpose.msra.mxu0 0.0
    %769 = vmatprep.subr.mxu0 0.0
    %770 = vmatpush1.xpose.msra.mxu0 0.0
    %771 = vmatprep.subr.mxu0 0.0
    %772 = vmatpush1.xpose.msra.mxu0 0.0
    %773 = vmatprep.subr.mxu0 0.0
    %774 = vmatpush1.xpose.msra.mxu0 0.0
    %775 = vmatprep.subr.mxu0 0.0
    %776 = vmatpush1.xpose.msra.mxu0 0.0
    %777 = vmatprep.subr.mxu0 0.0
    %778 = vmatpush1.xpose.msra.mxu0 0.0
    %779 = vmatprep.subr.mxu0 0.0
    %780 = vmatpush1.xpose.msra.mxu0 0.0
    %781 = vmatprep.subr.mxu0 0.0
    %782 = vmatpush1.xpose.msra.mxu0 0.0
    %783 = vmatprep.subr.mxu0 0.0
    %784 = vmatpush1.xpose.msra.mxu0 0.0
    %785 = vmatprep.subr.mxu0 0.0
    %786 = vmatpush1.xpose.msra.mxu0 0.0
    %787 = vmatprep.subr.mxu0 0.0
    %788 = vmatpush1.xpose.msra.mxu0 0.0
    %789 = vmatprep.subr.mxu0 0.0
    %790 = vmatpush1.xpose.msra.mxu0 0.0
    %791 = vmatprep.subr.mxu0 0.0
    %792 = vmatpush1.xpose.msra.mxu0 0.0
    %793 = vmatprep.subr.mxu0 0.0
    %794 = vmatpush1.xpose.msra.mxu0 0.0
    %795 = vmatprep.subr.mxu0 0.0
    %796 = vmatpush1.xpose.msra.mxu0 0.0
    %797 = vmatprep.subr.mxu0 0.0
    %798 = vmatpush1.xpose.msra.mxu0 0.0
    %799 = vmatprep.subr.mxu0 0.0
    %800 = vmatpush1.xpose.msra.mxu0 0.0
    %801 = vmatprep.subr.mxu0 0.0
    %802 = vmatpush1.xpose.msra.mxu0 0.0
    %803 = vmatprep.subr.mxu0 0.0
    %804 = vmatpush1.xpose.msra.mxu0 0.0
    %805 = vmatprep.subr.mxu0 0.0
    %806 = vmatpush1.xpose.msra.mxu0 0.0
    %807 = vmatprep.subr.mxu0 0.0
    %808 = vmatpush1.xpose.msra.mxu0 0.0
    %809 = vmatprep.subr.mxu0 0.0
    %810 = vmatpush1.xpose.msra.mxu0 0.0
    %811 = vmatprep.subr.mxu0 0.0
    %812 = vmatpush1.xpose.msra.mxu0 0.0
    %813 = vmatprep.mubr.f32.mxu0 0.0
    %814 = vmatmul.mubr.f32.gmra.mrb[0].mxu0 %v741
    %v815 = vpop.f32.mrb[0].mxu0
    %v816 = vadd.f32 0.0, %v815
    %v817 = vpop.f32.mrb[0].mxu0
    %818 = vmatprep.mubr.f32.mxu0 0.0
    %819 = vmatmul.mubr.f32.gmra.mrb[0].mxu0 %v743
    %v820 = vpop.f32.mrb[0].mxu0
    %v821 = vadd.f32 0.0, %v820
    %v822 = vpop.f32.mrb[0].mxu0
    %823 = vdwg.mxu0
    %v824 = vmul.f32 %v816, 0.35355338
    %v825 = vmul.f32 %v821, 0.35355338
    %v826 = vsel %vm259, %v824, -inf
    %827 = vmax.xlane.f32.xlu0 %v826
    %v828 = vpop.xlane.xlu0 %827
    %v829 = vsel %vm259, %v825, -inf
    %830 = vmax.xlane.f32.xlu0 %v829
    %v831 = vpop.xlane.xlu0 %830
    %v832 = vsub.f32 %v824, %v828
    %v833 = vsub.f32 %v825, %v831
    %v834 = vmul.f32 %v832, 1.442695
    %v835 = vpow.pop %v834
    %v836 = vmul.f32 %v833, 1.442695
    %v837 = vpow.pop %v836
    %v838 = vsel %vm259, %v835, 0.0
    %839 = vadd.xlane.f32.xlu0 %v838
    %v840 = vpop.xlane.xlu0 %839
    %v841 = vsel %vm259, %v837, 0.0
    %842 = vadd.xlane.f32.xlu0 %v841
    %v843 = vpop.xlane.xlu0 %842
    %844 = vrot.lane.b32.xlu0 %v159, 48
    %v845 = vpop.permute.xlu0 %844
    %846 = vrot.lane.b32.xlu0 %v164, 48
    %v847 = vpop.permute.xlu0 %846
    %v851 = vsel %vm259, %v835, 0
    %v854 = vsel %vm259, %v837, 0
    %856 = vmatprep.subr.mxu0 0.0
    %857 = vmatpush1.msra.mxu0 %v845
    %858 = vmatprep.subr.mxu0 0.0
    %859 = vmatpush1.msra.mxu0 %v847
    %860 = vmatprep.subr.mxu0 0.0
    %861 = vmatpush1.msra.mxu0 0.0
    %862 = vmatprep.subr.mxu0 0.0
    %863 = vmatpush1.msra.mxu0 0.0
    %864 = vmatprep.subr.mxu0 0.0
    %865 = vmatpush1.msra.mxu0 0.0
    %866 = vmatprep.subr.mxu0 0.0
    %867 = vmatpush1.msra.mxu0 0.0
    %868 = vmatprep.subr.mxu0 0.0
    %869 = vmatpush1.msra.mxu0 0.0
    %870 = vmatprep.subr.mxu0 0.0
    %871 = vmatpush1.msra.mxu0 0.0
    %872 = vmatprep.subr.mxu0 0.0
    %873 = vmatpush1.msra.mxu0 0.0
    %874 = vmatprep.subr.mxu0 0.0
    %875 = vmatpush1.msra.mxu0 0.0
    %876 = vmatprep.subr.mxu0 0.0
    %877 = vmatpush1.msra.mxu0 0.0
    %878 = vmatprep.subr.mxu0 0.0
    %879 = vmatpush1.msra.mxu0 0.0
    %880 = vmatprep.subr.mxu0 0.0
    %881 = vmatpush1.msra.mxu0 0.0
    %882 = vmatprep.subr.mxu0 0.0
    %883 = vmatpush1.msra.mxu0 0.0
    %884 = vmatprep.subr.mxu0 0.0
    %885 = vmatpush1.msra.mxu0 0.0
    %886 = vmatprep.subr.mxu0 0.0
    %887 = vmatpush1.msra.mxu0 0.0
    %888 = vmatprep.subr.mxu0 0.0
    %889 = vmatpush1.msra.mxu0 0.0
    %890 = vmatprep.subr.mxu0 0.0
    %891 = vmatpush1.msra.mxu0 0.0
    %892 = vmatprep.subr.mxu0 0.0
    %893 = vmatpush1.msra.mxu0 0.0
    %894 = vmatprep.subr.mxu0 0.0
    %895 = vmatpush1.msra.mxu0 0.0
    %896 = vmatprep.subr.mxu0 0.0
    %897 = vmatpush1.msra.mxu0 0.0
    %898 = vmatprep.subr.mxu0 0.0
    %899 = vmatpush1.msra.mxu0 0.0
    %900 = vmatprep.subr.mxu0 0.0
    %901 = vmatpush1.msra.mxu0 0.0
    %902 = vmatprep.subr.mxu0 0.0
    %903 = vmatpush1.msra.mxu0 0.0
    %904 = vmatprep.subr.mxu0 0.0
    %905 = vmatpush1.msra.mxu0 0.0
    %906 = vmatprep.subr.mxu0 0.0
    %907 = vmatpush1.msra.mxu0 0.0
    %908 = vmatprep.subr.mxu0 0.0
    %909 = vmatpush1.msra.mxu0 0.0
    %910 = vmatprep.subr.mxu0 0.0
    %911 = vmatpush1.msra.mxu0 0.0
    %912 = vmatprep.subr.mxu0 0.0
    %913 = vmatpush1.msra.mxu0 0.0
    %914 = vmatprep.subr.mxu0 0.0
    %915 = vmatpush1.msra.mxu0 0.0
    %916 = vmatprep.subr.mxu0 0.0
    %917 = vmatpush1.msra.mxu0 0.0
    %918 = vmatprep.subr.mxu0 0.0
    %919 = vmatpush1.msra.mxu0 0.0
    %920 = vmatprep.mubr.f32.mxu0 0.0
    %921 = vmatmul.mubr.f32.gmra.mrb[0].mxu0 %v851
    %v922 = vpop.f32.mrb[0].mxu0
    %v923 = vadd.f32 0.0, %v922
    %v924 = vpop.f32.mrb[0].mxu0
    %925 = vmatprep.mubr.f32.mxu0 0.0
    %926 = vmatmul.mubr.f32.gmra.mrb[0].mxu0 %v854
    %v927 = vpop.f32.mrb[0].mxu0
    %v928 = vadd.f32 0.0, %v927
    %v929 = vpop.f32.mrb[0].mxu0
    %930 = vdwg.mxu0
    %v931 = vrcp.pop %v840
    %v932 = vmul.f32 %v923, %v931
    %v933 = vrcp.pop %v843
    %v934 = vmul.f32 %v928, %v933
    %v936 = vsel %vm173, %v932, 0
    %v939 = vsel %vm173, %v934, 0
    %941 = vmatprep.subr.mxu0 0.0
    %942 = vmatpush1.msra.mxu0 %v76
    %943 = vmatprep.subr.mxu0 0.0
    %944 = vmatpush1.msra.mxu0 0.0
    %945 = vmatprep.subr.mxu0 0.0
    %946 = vmatpush1.msra.mxu0 0.0
    %947 = vmatprep.subr.mxu0 0.0
    %948 = vmatpush1.msra.mxu0 0.0
    %949 = vmatprep.subr.mxu0 0.0
    %950 = vmatpush1.msra.mxu0 0.0
    %951 = vmatprep.subr.mxu0 0.0
    %952 = vmatpush1.msra.mxu0 0.0
    %953 = vmatprep.subr.mxu0 0.0
    %954 = vmatpush1.msra.mxu0 0.0
    %955 = vmatprep.subr.mxu0 0.0
    %956 = vmatpush1.msra.mxu0 0.0
    %957 = vmatprep.subr.mxu0 0.0
    %958 = vmatpush1.msra.mxu0 0.0
    %959 = vmatprep.subr.mxu0 0.0
    %960 = vmatpush1.msra.mxu0 0.0
    %961 = vmatprep.subr.mxu0 0.0
    %962 = vmatpush1.msra.mxu0 0.0
    %963 = vmatprep.subr.mxu0 0.0
    %964 = vmatpush1.msra.mxu0 0.0
    %965 = vmatprep.subr.mxu0 0.0
    %966 = vmatpush1.msra.mxu0 0.0
    %967 = vmatprep.subr.mxu0 0.0
    %968 = vmatpush1.msra.mxu0 0.0
    %969 = vmatprep.subr.mxu0 0.0
    %970 = vmatpush1.msra.mxu0 0.0
    %971 = vmatprep.subr.mxu0 0.0
    %972 = vmatpush1.msra.mxu0 0.0
    %973 = vmatprep.subr.mxu0 0.0
    %974 = vmatpush1.msra.mxu0 0.0
    %975 = vmatprep.subr.mxu0 0.0
    %976 = vmatpush1.msra.mxu0 0.0
    %977 = vmatprep.subr.mxu0 0.0
    %978 = vmatpush1.msra.mxu0 0.0
    %979 = vmatprep.subr.mxu0 0.0
    %980 = vmatpush1.msra.mxu0 0.0
    %981 = vmatprep.subr.mxu0 0.0
    %982 = vmatpush1.msra.mxu0 0.0
    %983 = vmatprep.subr.mxu0 0.0
    %984 = vmatpush1.msra.mxu0 0.0
    %985 = vmatprep.subr.mxu0 0.0
    %986 = vmatpush1.msra.mxu0 0.0
    %987 = vmatprep.subr.mxu0 0.0
    %988 = vmatpush1.msra.mxu0 0.0
    %989 = vmatprep.subr.mxu0 0.0
    %990 = vmatpush1.msra.mxu0 0.0
    %991 = vmatprep.subr.mxu0 0.0
    %992 = vmatpush1.msra.mxu0 0.0
    %993 = vmatprep.subr.mxu0 0.0
    %994 = vmatpush1.msra.mxu0 0.0
    %995 = vmatprep.subr.mxu0 0.0
    %996 = vmatpush1.msra.mxu0 0.0
    %997 = vmatprep.subr.mxu0 0.0
    %998 = vmatpush1.msra.mxu0 0.0
    %999 = vmatprep.subr.mxu0 0.0
    %1000 = vmatpush1.msra.mxu0 0.0
    %1001 = vmatprep.subr.mxu0 0.0
    %1002 = vmatpush1.msra.mxu0 0.0
    %1003 = vmatprep.subr.mxu0 0.0
    %1004 = vmatpush1.msra.mxu0 0.0
    %1005 = vmatprep.mubr.f32.mxu0 0.0
    %1006 = vmatmul.mubr.f32.gmra.mrb[0].mxu0 %v936
    %v1007 = vpop.f32.mrb[0].mxu0
    %v1008 = vadd.f32 0.0, %v1007
    %v1009 = vpop.f32.mrb[0].mxu0
    %1010 = vmatprep.mubr.f32.mxu0 0.0
    %1011 = vmatmul.mubr.f32.gmra.mrb[0].mxu0 %v939
    %v1012 = vpop.f32.mrb[0].mxu0
    %v1013 = vadd.f32 0.0, %v1012
    %v1014 = vpop.f32.mrb[0].mxu0
    %1015 = vdwg.mxu0
    %v1016 = vadd.f32 %v725, %v1008
    %v1017 = vadd.f32 %v730, %v1013
    %1018 = vrot.lane.b32.xlu0 %v159, 104
    %v1019 = vpop.permute.xlu0 %1018
    %1020 = vrot.lane.b32.xlu0 %v164, 104
    %v1021 = vpop.permute.xlu0 %1020
    %1022 = vrot.lane.b32.xlu0 %v159, 72
    %v1023 = vpop.permute.xlu0 %1022
    %1024 = vrot.lane.b32.xlu0 %v164, 72
    %v1025 = vpop.permute.xlu0 %1024
    %v1026 = vsel %vm173, %v1019, 0
    %v1028 = vsel %vm173, %v1021, 0
    %v1030 = vsel %vm173, %v1023, 0
    %v1032 = vsel %vm173, %v1025, 0
    %1034 = vmatprep.subr.mxu0 0.0
    %1035 = vmatpush1.xpose.msra.mxu0 %v1030
    %1036 = vmatprep.subr.mxu0 0.0
    %1037 = vmatpush1.xpose.msra.mxu0 %v1032
    %1038 = vmatprep.subr.mxu0 0.0
    %1039 = vmatpush1.xpose.msra.mxu0 0.0
    %1040 = vmatprep.subr.mxu0 0.0
    %1041 = vmatpush1.xpose.msra.mxu0 0.0
    %1042 = vmatprep.subr.mxu0 0.0
    %1043 = vmatpush1.xpose.msra.mxu0 0.0
    %1044 = vmatprep.subr.mxu0 0.0
    %1045 = vmatpush1.xpose.msra.mxu0 0.0
    %1046 = vmatprep.subr.mxu0 0.0
    %1047 = vmatpush1.xpose.msra.mxu0 0.0
    %1048 = vmatprep.subr.mxu0 0.0
    %1049 = vmatpush1.xpose.msra.mxu0 0.0
    %1050 = vmatprep.subr.mxu0 0.0
    %1051 = vmatpush1.xpose.msra.mxu0 0.0
    %1052 = vmatprep.subr.mxu0 0.0
    %1053 = vmatpush1.xpose.msra.mxu0 0.0
    %1054 = vmatprep.subr.mxu0 0.0
    %1055 = vmatpush1.xpose.msra.mxu0 0.0
    %1056 = vmatprep.subr.mxu0 0.0
    %1057 = vmatpush1.xpose.msra.mxu0 0.0
    %1058 = vmatprep.subr.mxu0 0.0
    %1059 = vmatpush1.xpose.msra.mxu0 0.0
    %1060 = vmatprep.subr.mxu0 0.0
    %1061 = vmatpush1.xpose.msra.mxu0 0.0
    %1062 = vmatprep.subr.mxu0 0.0
    %1063 = vmatpush1.xpose.msra.mxu0 0.0
    %1064 = vmatprep.subr.mxu0 0.0
    %1065 = vmatpush1.xpose.msra.mxu0 0.0
    %1066 = vmatprep.subr.mxu0 0.0
    %1067 = vmatpush1.xpose.msra.mxu0 0.0
    %1068 = vmatprep.subr.mxu0 0.0
    %1069 = vmatpush1.xpose.msra.mxu0 0.0
    %1070 = vmatprep.subr.mxu0 0.0
    %1071 = vmatpush1.xpose.msra.mxu0 0.0
    %1072 = vmatprep.subr.mxu0 0.0
    %1073 = vmatpush1.xpose.msra.mxu0 0.0
    %1074 = vmatprep.subr.mxu0 0.0
    %1075 = vmatpush1.xpose.msra.mxu0 0.0
    %1076 = vmatprep.subr.mxu0 0.0
    %1077 = vmatpush1.xpose.msra.mxu0 0.0
    %1078 = vmatprep.subr.mxu0 0.0
    %1079 = vmatpush1.xpose.msra.mxu0 0.0
    %1080 = vmatprep.subr.mxu0 0.0
    %1081 = vmatpush1.xpose.msra.mxu0 0.0
    %1082 = vmatprep.subr.mxu0 0.0
    %1083 = vmatpush1.xpose.msra.mxu0 0.0
    %1084 = vmatprep.subr.mxu0 0.0
    %1085 = vmatpush1.xpose.msra.mxu0 0.0
    %1086 = vmatprep.subr.mxu0 0.0
    %1087 = vmatpush1.xpose.msra.mxu0 0.0
    %1088 = vmatprep.subr.mxu0 0.0
    %1089 = vmatpush1.xpose.msra.mxu0 0.0
    %1090 = vmatprep.subr.mxu0 0.0
    %1091 = vmatpush1.xpose.msra.mxu0 0.0
    %1092 = vmatprep.subr.mxu0 0.0
    %1093 = vmatpush1.xpose.msra.mxu0 0.0
    %1094 = vmatprep.subr.mxu0 0.0
    %1095 = vmatpush1.xpose.msra.mxu0 0.0
    %1096 = vmatprep.subr.mxu0 0.0
    %1097 = vmatpush1.xpose.msra.mxu0 0.0
    %1098 = vmatprep.mubr.f32.mxu0 0.0
    %1099 = vmatmul.mubr.f32.gmra.mrb[0].mxu0 %v1026
    %v1100 = vpop.f32.mrb[0].mxu0
    %v1101 = vadd.f32 0.0, %v1100
    %v1102 = vpop.f32.mrb[0].mxu0
    %1103 = vmatprep.mubr.f32.mxu0 0.0
    %1104 = vmatmul.mubr.f32.gmra.mrb[0].mxu0 %v1028
    %v1105 = vpop.f32.mrb[0].mxu0
    %v1106 = vadd.f32 0.0, %v1105
    %v1107 = vpop.f32.mrb[0].mxu0
    %1108 = vdwg.mxu0
    %v1109 = vmul.f32 %v1101, 0.35355338
    %v1110 = vmul.f32 %v1106, 0.35355338
    %v1111 = vsel %vm259, %v1109, -inf
    %1112 = vmax.xlane.f32.xlu0 %v1111
    %v1113 = vpop.xlane.xlu0 %1112
    %v1114 = vsel %vm259, %v1110, -inf
    %1115 = vmax.xlane.f32.xlu0 %v1114
    %v1116 = vpop.xlane.xlu0 %1115
    %v1117 = vsub.f32 %v1109, %v1113
    %v1118 = vsub.f32 %v1110, %v1116
    %v1119 = vmul.f32 %v1117, 1.442695
    %v1120 = vpow.pop %v1119
    %v1121 = vmul.f32 %v1118, 1.442695
    %v1122 = vpow.pop %v1121
    %v1123 = vsel %vm259, %v1120, 0.0
    %1124 = vadd.xlane.f32.xlu0 %v1123
    %v1125 = vpop.xlane.xlu0 %1124
    %v1126 = vsel %vm259, %v1122, 0.0
    %1127 = vadd.xlane.f32.xlu0 %v1126
    %v1128 = vpop.xlane.xlu0 %1127
    %1129 = vrot.lane.b32.xlu0 %v159, 40
    %v1130 = vpop.permute.xlu0 %1129
    %1131 = vrot.lane.b32.xlu0 %v164, 40
    %v1132 = vpop.permute.xlu0 %1131
    %v1136 = vsel %vm259, %v1120, 0
    %v1139 = vsel %vm259, %v1122, 0
    %1141 = vmatprep.subr.mxu0 0.0
    %1142 = vmatpush1.msra.mxu0 %v1130
    %1143 = vmatprep.subr.mxu0 0.0
    %1144 = vmatpush1.msra.mxu0 %v1132
    %1145 = vmatprep.subr.mxu0 0.0
    %1146 = vmatpush1.msra.mxu0 0.0
    %1147 = vmatprep.subr.mxu0 0.0
    %1148 = vmatpush1.msra.mxu0 0.0
    %1149 = vmatprep.subr.mxu0 0.0
    %1150 = vmatpush1.msra.mxu0 0.0
    %1151 = vmatprep.subr.mxu0 0.0
    %1152 = vmatpush1.msra.mxu0 0.0
    %1153 = vmatprep.subr.mxu0 0.0
    %1154 = vmatpush1.msra.mxu0 0.0
    %1155 = vmatprep.subr.mxu0 0.0
    %1156 = vmatpush1.msra.mxu0 0.0
    %1157 = vmatprep.subr.mxu0 0.0
    %1158 = vmatpush1.msra.mxu0 0.0
    %1159 = vmatprep.subr.mxu0 0.0
    %1160 = vmatpush1.msra.mxu0 0.0
    %1161 = vmatprep.subr.mxu0 0.0
    %1162 = vmatpush1.msra.mxu0 0.0
    %1163 = vmatprep.subr.mxu0 0.0
    %1164 = vmatpush1.msra.mxu0 0.0
    %1165 = vmatprep.subr.mxu0 0.0
    %1166 = vmatpush1.msra.mxu0 0.0
    %1167 = vmatprep.subr.mxu0 0.0
    %1168 = vmatpush1.msra.mxu0 0.0
    %1169 = vmatprep.subr.mxu0 0.0
    %1170 = vmatpush1.msra.mxu0 0.0
    %1171 = vmatprep.subr.mxu0 0.0
    %1172 = vmatpush1.msra.mxu0 0.0
    %1173 = vmatprep.subr.mxu0 0.0
    %1174 = vmatpush1.msra.mxu0 0.0
    %1175 = vmatprep.subr.mxu0 0.0
    %1176 = vmatpush1.msra.mxu0 0.0
    %1177 = vmatprep.subr.mxu0 0.0
    %1178 = vmatpush1.msra.mxu0 0.0
    %1179 = vmatprep.subr.mxu0 0.0
    %1180 = vmatpush1.msra.mxu0 0.0
    %1181 = vmatprep.subr.mxu0 0.0
    %1182 = vmatpush1.msra.mxu0 0.0
    %1183 = vmatprep.subr.mxu0 0.0
    %1184 = vmatpush1.msra.mxu0 0.0
    %1185 = vmatprep.subr.mxu0 0.0
    %1186 = vmatpush1.msra.mxu0 0.0
    %1187 = vmatprep.subr.mxu0 0.0
    %1188 = vmatpush1.msra.mxu0 0.0
    %1189 = vmatprep.subr.mxu0 0.0
    %1190 = vmatpush1.msra.mxu0 0.0
    %1191 = vmatprep.subr.mxu0 0.0
    %1192 = vmatpush1.msra.mxu0 0.0
    %1193 = vmatprep.subr.mxu0 0.0
    %1194 = vmatpush1.msra.mxu0 0.0
    %1195 = vmatprep.subr.mxu0 0.0
    %1196 = vmatpush1.msra.mxu0 0.0
    %1197 = vmatprep.subr.mxu0 0.0
    %1198 = vmatpush1.msra.mxu0 0.0
    %1199 = vmatprep.subr.mxu0 0.0
    %1200 = vmatpush1.msra.mxu0 0.0
    %1201 = vmatprep.subr.mxu0 0.0
    %1202 = vmatpush1.msra.mxu0 0.0
    %1203 = vmatprep.subr.mxu0 0.0
    %1204 = vmatpush1.msra.mxu0 0.0
    %1205 = vmatprep.mubr.f32.mxu0 0.0
    %1206 = vmatmul.mubr.f32.gmra.mrb[0].mxu0 %v1136
    %v1207 = vpop.f32.mrb[0].mxu0
    %v1208 = vadd.f32 0.0, %v1207
    %v1209 = vpop.f32.mrb[0].mxu0
    %1210 = vmatprep.mubr.f32.mxu0 0.0
    %1211 = vmatmul.mubr.f32.gmra.mrb[0].mxu0 %v1139
    %v1212 = vpop.f32.mrb[0].mxu0
    %v1213 = vadd.f32 0.0, %v1212
    %v1214 = vpop.f32.mrb[0].mxu0
    %1215 = vdwg.mxu0
    %v1216 = vrcp.pop %v1125
    %v1217 = vmul.f32 %v1208, %v1216
    %v1218 = vrcp.pop %v1128
    %v1219 = vmul.f32 %v1213, %v1218
    %v1221 = vsel %vm173, %v1217, 0
    %v1224 = vsel %vm173, %v1219, 0
    %1226 = vmatprep.subr.mxu0 0.0
    %1227 = vmatpush1.msra.mxu0 %v77
    %1228 = vmatprep.subr.mxu0 0.0
    %1229 = vmatpush1.msra.mxu0 0.0
    %1230 = vmatprep.subr.mxu0 0.0
    %1231 = vmatpush1.msra.mxu0 0.0
    %1232 = vmatprep.subr.mxu0 0.0
    %1233 = vmatpush1.msra.mxu0 0.0
    %1234 = vmatprep.subr.mxu0 0.0
    %1235 = vmatpush1.msra.mxu0 0.0
    %1236 = vmatprep.subr.mxu0 0.0
    %1237 = vmatpush1.msra.mxu0 0.0
    %1238 = vmatprep.subr.mxu0 0.0
    %1239 = vmatpush1.msra.mxu0 0.0
    %1240 = vmatprep.subr.mxu0 0.0
    %1241 = vmatpush1.msra.mxu0 0.0
    %1242 = vmatprep.subr.mxu0 0.0
    %1243 = vmatpush1.msra.mxu0 0.0
    %1244 = vmatprep.subr.mxu0 0.0
    %1245 = vmatpush1.msra.mxu0 0.0
    %1246 = vmatprep.subr.mxu0 0.0
    %1247 = vmatpush1.msra.mxu0 0.0
    %1248 = vmatprep.subr.mxu0 0.0
    %1249 = vmatpush1.msra.mxu0 0.0
    %1250 = vmatprep.subr.mxu0 0.0
    %1251 = vmatpush1.msra.mxu0 0.0
    %1252 = vmatprep.subr.mxu0 0.0
    %1253 = vmatpush1.msra.mxu0 0.0
    %1254 = vmatprep.subr.mxu0 0.0
    %1255 = vmatpush1.msra.mxu0 0.0
    %1256 = vmatprep.subr.mxu0 0.0
    %1257 = vmatpush1.msra.mxu0 0.0
    %1258 = vmatprep.subr.mxu0 0.0
    %1259 = vmatpush1.msra.mxu0 0.0
    %1260 = vmatprep.subr.mxu0 0.0
    %1261 = vmatpush1.msra.mxu0 0.0
    %1262 = vmatprep.subr.mxu0 0.0
    %1263 = vmatpush1.msra.mxu0 0.0
    %1264 = vmatprep.subr.mxu0 0.0
    %1265 = vmatpush1.msra.mxu0 0.0
    %1266 = vmatprep.subr.mxu0 0.0
    %1267 = vmatpush1.msra.mxu0 0.0
    %1268 = vmatprep.subr.mxu0 0.0
    %1269 = vmatpush1.msra.mxu0 0.0
    %1270 = vmatprep.subr.mxu0 0.0
    %1271 = vmatpush1.msra.mxu0 0.0
    %1272 = vmatprep.subr.mxu0 0.0
    %1273 = vmatpush1.msra.mxu0 0.0
    %1274 = vmatprep.subr.mxu0 0.0
    %1275 = vmatpush1.msra.mxu0 0.0
    %1276 = vmatprep.subr.mxu0 0.0
    %1277 = vmatpush1.msra.mxu0 0.0
    %1278 = vmatprep.subr.mxu0 0.0
    %1279 = vmatpush1.msra.mxu0 0.0
    %1280 = vmatprep.subr.mxu0 0.0
    %1281 = vmatpush1.msra.mxu0 0.0
    %1282 = vmatprep.subr.mxu0 0.0
    %1283 = vmatpush1.msra.mxu0 0.0
    %1284 = vmatprep.subr.mxu0 0.0
    %1285 = vmatpush1.msra.mxu0 0.0
    %1286 = vmatprep.subr.mxu0 0.0
    %1287 = vmatpush1.msra.mxu0 0.0
    %1288 = vmatprep.subr.mxu0 0.0
    %1289 = vmatpush1.msra.mxu0 0.0
    %1290 = vmatprep.mubr.f32.mxu0 0.0
    %1291 = vmatmul.mubr.f32.gmra.mrb[0].mxu0 %v1221
    %v1292 = vpop.f32.mrb[0].mxu0
    %v1293 = vadd.f32 0.0, %v1292
    %v1294 = vpop.f32.mrb[0].mxu0
    %1295 = vmatprep.mubr.f32.mxu0 0.0
    %1296 = vmatmul.mubr.f32.gmra.mrb[0].mxu0 %v1224
    %v1297 = vpop.f32.mrb[0].mxu0
    %v1298 = vadd.f32 0.0, %v1297
    %v1299 = vpop.f32.mrb[0].mxu0
    %1300 = vdwg.mxu0
    %v1301 = vadd.f32 %v1016, %v1293
    %v1302 = vadd.f32 %v1017, %v1298
    %v1304 = vlaneseq
    %v1305 = vshrl.u32 %v1304, 7
    %v1306 = vsub.s32 0, %v1305
    %v1307 = vrot.slane %v78, %v1306
    %v1309 = vadd.f32 %v1301, %v1307
    %v1310 = vadd.f32 %v1302, %v1307
    %v1311 = vadd.f32 %v67, %v1309
    %v1312 = vadd.f32 %v68, %v1310
    %v1313 = vld [vmem:[%s6] sm:$0x1]
    %v1314 = vld [vmem:[%s7] sm:$0x1]
    %v1315 = vsel %vm85, %v1311, 0.0
    %1316 = vadd.xlane.f32.xlu0 %v1315
    %v1317 = vpop.xlane.xlu0 %1316
    %v1318 = vsel %vm85, %v1312, 0.0
    %1319 = vadd.xlane.f32.xlu0 %v1318
    %v1320 = vpop.xlane.xlu0 %1319
    %v1321 = vrcp.pop 32.0
    %v1322 = vmul.f32 %v1317, %v1321
    %v1323 = vmul.f32 %v1320, %v1321
    %v1324 = vsub.f32 %v1311, %v1322
    %v1325 = vsub.f32 %v1312, %v1323
    %v1326 = vmul.f32 %v1324, %v1324
    %v1327 = vmul.f32 %v1325, %v1325
    %v1328 = vsel %vm85, %v1326, 0.0
    %1329 = vadd.xlane.f32.xlu0 %v1328
    %v1330 = vpop.xlane.xlu0 %1329
    %v1331 = vsel %vm85, %v1327, 0.0
    %1332 = vadd.xlane.f32.xlu0 %v1331
    %v1333 = vpop.xlane.xlu0 %1332
    %v1334 = vmul.f32 %v1330, %v1321
    %v1335 = vmul.f32 %v1333, %v1321
    %v1336 = vadd.f32 %v1334, 1e-05
    %v1337 = vadd.f32 %v1335, 1e-05
    %v1338 = vrsqrt.pop %v1336
    %v1339 = vrsqrt.pop %v1337
    %v1340 = vmul.f32 %v1324, %v1338
    %v1341 = vmul.f32 %v1325, %v1339
    %v1343 = vlaneseq
    %v1344 = vshrl.u32 %v1343, 7
    %v1345 = vsub.s32 0, %v1344
    %v1346 = vrot.slane %v1313, %v1345
    %v1348 = vmul.f32 %v1340, %v1346
    %v1349 = vmul.f32 %v1341, %v1346
    %v1351 = vlaneseq
    %v1352 = vshrl.u32 %v1351, 7
    %v1353 = vsub.s32 0, %v1352
    %v1354 = vrot.slane %v1314, %v1353
    %v1356 = vadd.f32 %v1348, %v1354
    %v1357 = vadd.f32 %v1349, %v1354
    %v1358 = vld [vmem:[%s8] sm:$0xff]
    %v1359 = vld [vmem:[%s8 + $0x8] sm:$0xff]
    %v1360 = vld [vmem:[%s8 + $0x10] sm:$0xff]
    %v1361 = vld [vmem:[%s8 + $0x18] sm:$0xff]
    %v1362 = vld [vmem:[%s9] sm:$0x1]
    %v1363 = vld [vmem:[%s10] sm:$0xff]
    %v1364 = vld [vmem:[%s10 + $0x8] sm:$0xff]
    %v1365 = vld [vmem:[%s10 + $0x10] sm:$0xff]
    %v1366 = vld [vmem:[%s10 + $0x18] sm:$0xff]
    %v1367 = vld [vmem:[%s10 + $0x20] sm:$0xff]
    %v1368 = vld [vmem:[%s10 + $0x28] sm:$0xff]
    %v1369 = vld [vmem:[%s10 + $0x30] sm:$0xff]
    %v1370 = vld [vmem:[%s10 + $0x38] sm:$0xff]
    %v1371 = vld [vmem:[%s11] sm:$0x1]
    %v1373 = vlaneseq
    %v1374 = vshrl.u32 %v1373, 7
    %v1375 = vsub.s32 0, %v1374
    %v1376 = vrot.slane %v1362, %v1375
    %v1379 = vsel %vm85, %v1356, 0
    %v1382 = vsel %vm85, %v1357, 0
    %1384 = vmatprep.subr.mxu0 0.0
    %1385 = vmatpush1.msra.mxu0 %v1358
    %1386 = vmatprep.subr.mxu0 0.0
    %1387 = vmatpush1.msra.mxu0 %v1359
    %1388 = vmatprep.subr.mxu0 0.0
    %1389 = vmatpush1.msra.mxu0 %v1360
    %1390 = vmatprep.subr.mxu0 0.0
    %1391 = vmatpush1.msra.mxu0 %v1361
    %1392 = vmatprep.subr.mxu0 0.0
    %1393 = vmatpush1.msra.mxu0 0.0
    %1394 = vmatprep.subr.mxu0 0.0
    %1395 = vmatpush1.msra.mxu0 0.0
    %1396 = vmatprep.subr.mxu0 0.0
    %1397 = vmatpush1.msra.mxu0 0.0
    %1398 = vmatprep.subr.mxu0 0.0
    %1399 = vmatpush1.msra.mxu0 0.0
    %1400 = vmatprep.subr.mxu0 0.0
    %1401 = vmatpush1.msra.mxu0 0.0
    %1402 = vmatprep.subr.mxu0 0.0
    %1403 = vmatpush1.msra.mxu0 0.0
    %1404 = vmatprep.subr.mxu0 0.0
    %1405 = vmatpush1.msra.mxu0 0.0
    %1406 = vmatprep.subr.mxu0 0.0
    %1407 = vmatpush1.msra.mxu0 0.0
    %1408 = vmatprep.subr.mxu0 0.0
    %1409 = vmatpush1.msra.mxu0 0.0
    %1410 = vmatprep.subr.mxu0 0.0
    %1411 = vmatpush1.msra.mxu0 0.0
    %1412 = vmatprep.subr.mxu0 0.0
    %1413 = vmatpush1.msra.mxu0 0.0
    %1414 = vmatprep.subr.mxu0 0.0
    %1415 = vmatpush1.msra.mxu0 0.0
    %1416 = vmatprep.subr.mxu0 0.0
    %1417 = vmatpush1.msra.mxu0 0.0
    %1418 = vmatprep.subr.mxu0 0.0
    %1419 = vmatpush1.msra.mxu0 0.0
    %1420 = vmatprep.subr.mxu0 0.0
    %1421 = vmatpush1.msra.mxu0 0.0
    %1422 = vmatprep.subr.mxu0 0.0
    %1423 = vmatpush1.msra.mxu0 0.0
    %1424 = vmatprep.subr.mxu0 0.0
    %1425 = vmatpush1.msra.mxu0 0.0
    %1426 = vmatprep.subr.mxu0 0.0
    %1427 = vmatpush1.msra.mxu0 0.0
    %1428 = vmatprep.subr.mxu0 0.0
    %1429 = vmatpush1.msra.mxu0 0.0
    %1430 = vmatprep.subr.mxu0 0.0
    %1431 = vmatpush1.msra.mxu0 0.0
    %1432 = vmatprep.subr.mxu0 0.0
    %1433 = vmatpush1.msra.mxu0 0.0
    %1434 = vmatprep.subr.mxu0 0.0
    %1435 = vmatpush1.msra.mxu0 0.0
    %1436 = vmatprep.subr.mxu0 0.0
    %1437 = vmatpush1.msra.mxu0 0.0
    %1438 = vmatprep.subr.mxu0 0.0
    %1439 = vmatpush1.msra.mxu0 0.0
    %1440 = vmatprep.subr.mxu0 0.0
    %1441 = vmatpush1.msra.mxu0 0.0
    %1442 = vmatprep.subr.mxu0 0.0
    %1443 = vmatpush1.msra.mxu0 0.0
    %1444 = vmatprep.subr.mxu0 0.0
    %1445 = vmatpush1.msra.mxu0 0.0
    %1446 = vmatprep.subr.mxu0 0.0
    %1447 = vmatpush1.msra.mxu0 0.0
    %1448 = vmatprep.mubr.f32.mxu0 0.0
    %1449 = vmatmul.mubr.f32.gmra.mrb[0].mxu0 %v1379
    %v1450 = vpop.f32.mrb[0].mxu0
    %v1451 = vadd.f32 %v1376, %v1450
    %v1452 = vpop.f32.mrb[0].mxu0
    %1453 = vmatprep.mubr.f32.mxu0 0.0
    %1454 = vmatmul.mubr.f32.gmra.mrb[0].mxu0 %v1382
    %v1455 = vpop.f32.mrb[0].mxu0
    %v1456 = vadd.f32 %v1376, %v1455
    %v1457 = vpop.f32.mrb[0].mxu0
    %1458 = vdwg.mxu0
    %v1459 = vmax.f32 %v1451, 0.0
    %v1460 = vmax.f32 %v1456, 0.0
    %v1462 = vlaneseq
    %v1463 = vshrl.u32 %v1462, 7
    %v1464 = vsub.s32 0, %v1463
    %v1465 = vrot.slane %v1371, %v1464
    %vm1467 = vcmask 523264
    %v1469 = vsel %vm1467, %v1459, 0
    %v1472 = vsel %vm1467, %v1460, 0
    %1474 = vmatprep.subr.mxu0 0.0
    %1475 = vmatpush1.msra.mxu0 %v1363
    %1476 = vmatprep.subr.mxu0 0.0
    %1477 = vmatpush1.msra.mxu0 %v1364
    %1478 = vmatprep.subr.mxu0 0.0
    %1479 = vmatpush1.msra.mxu0 %v1365
    %1480 = vmatprep.subr.mxu0 0.0
    %1481 = vmatpush1.msra.mxu0 %v1366
    %1482 = vmatprep.subr.mxu0 0.0
    %1483 = vmatpush1.msra.mxu0 %v1367
    %1484 = vmatprep.subr.mxu0 0.0
    %1485 = vmatpush1.msra.mxu0 %v1368
    %1486 = vmatprep.subr.mxu0 0.0
    %1487 = vmatpush1.msra.mxu0 %v1369
    %1488 = vmatprep.subr.mxu0 0.0
    %1489 = vmatpush1.msra.mxu0 %v1370
    %1490 = vmatprep.subr.mxu0 0.0
    %1491 = vmatpush1.msra.mxu0 0.0
    %1492 = vmatprep.subr.mxu0 0.0
    %1493 = vmatpush1.msra.mxu0 0.0
    %1494 = vmatprep.subr.mxu0 0.0
    %1495 = vmatpush1.msra.mxu0 0.0
    %1496 = vmatprep.subr.mxu0 0.0
    %1497 = vmatpush1.msra.mxu0 0.0
    %1498 = vmatprep.subr.mxu0 0.0
    %1499 = vmatpush1.msra.mxu0 0.0
    %1500 = vmatprep.subr.mxu0 0.0
    %1501 = vmatpush1.msra.mxu0 0.0
    %1502 = vmatprep.subr.mxu0 0.0
    %1503 = vmatpush1.msra.mxu0 0.0
    %1504 = vmatprep.subr.mxu0 0.0
    %1505 = vmatpush1.msra.mxu0 0.0
    %1506 = vmatprep.subr.mxu0 0.0
    %1507 = vmatpush1.msra.mxu0 0.0
    %1508 = vmatprep.subr.mxu0 0.0
    %1509 = vmatpush1.msra.mxu0 0.0
    %1510 = vmatprep.subr.mxu0 0.0
    %1511 = vmatpush1.msra.mxu0 0.0
    %1512 = vmatprep.subr.mxu0 0.0
    %1513 = vmatpush1.msra.mxu0 0.0
    %1514 = vmatprep.subr.mxu0 0.0
    %1515 = vmatpush1.msra.mxu0 0.0
    %1516 = vmatprep.subr.mxu0 0.0
    %1517 = vmatpush1.msra.mxu0 0.0
    %1518 = vmatprep.subr.mxu0 0.0
    %1519 = vmatpush1.msra.mxu0 0.0
    %1520 = vmatprep.subr.mxu0 0.0
    %1521 = vmatpush1.msra.mxu0 0.0
    %1522 = vmatprep.subr.mxu0 0.0
    %1523 = vmatpush1.msra.mxu0 0.0
    %1524 = vmatprep.subr.mxu0 0.0
    %1525 = vmatpush1.msra.mxu0 0.0
    %1526 = vmatprep.subr.mxu0 0.0
    %1527 = vmatpush1.msra.mxu0 0.0
    %1528 = vmatprep.subr.mxu0 0.0
    %1529 = vmatpush1.msra.mxu0 0.0
    %1530 = vmatprep.subr.mxu0 0.0
    %1531 = vmatpush1.msra.mxu0 0.0
    %1532 = vmatprep.subr.mxu0 0.0
    %1533 = vmatpush1.msra.mxu0 0.0
    %1534 = vmatprep.subr.mxu0 0.0
    %1535 = vmatpush1.msra.mxu0 0.0
    %1536 = vmatprep.subr.mxu0 0.0
    %1537 = vmatpush1.msra.mxu0 0.0
    %1538 = vmatprep.mubr.f32.mxu0 0.0
    %1539 = vmatmul.mubr.f32.gmra.mrb[0].mxu0 %v1469
    %v1540 = vpop.f32.mrb[0].mxu0
    %v1541 = vadd.f32 %v1465, %v1540
    %v1542 = vpop.f32.mrb[0].mxu0
    %1543 = vmatprep.mubr.f32.mxu0 0.0
    %1544 = vmatmul.mubr.f32.gmra.mrb[0].mxu0 %v1472
    %v1545 = vpop.f32.mrb[0].mxu0
    %v1546 = vadd.f32 %v1465, %v1545
    %v1547 = vpop.f32.mrb[0].mxu0
    %1548 = vdwg.mxu0
    %v1549 = vadd.f32 %v1356, %v1541
    %v1550 = vadd.f32 %v1357, %v1546
    %v1551 = vld [vmem:[%s12] sm:$0x1]
    %v1552 = vld [vmem:[%s13] sm:$0x1]
    %v1553 = vsel %vm85, %v1549, 0.0
    %1554 = vadd.xlane.f32.xlu0 %v1553
    %v1555 = vpop.xlane.xlu0 %1554
    %v1556 = vsel %vm85, %v1550, 0.0
    %1557 = vadd.xlane.f32.xlu0 %v1556
    %v1558 = vpop.xlane.xlu0 %1557
    %v1559 = vmul.f32 %v1555, %v1321
    %v1560 = vmul.f32 %v1558, %v1321
    %v1561 = vsub.f32 %v1549, %v1559
    %v1562 = vsub.f32 %v1550, %v1560
    %v1563 = vmul.f32 %v1561, %v1561
    %v1564 = vmul.f32 %v1562, %v1562
    %v1565 = vsel %vm85, %v1563, 0.0
    %1566 = vadd.xlane.f32.xlu0 %v1565
    %v1567 = vpop.xlane.xlu0 %1566
    %v1568 = vsel %vm85, %v1564, 0.0
    %1569 = vadd.xlane.f32.xlu0 %v1568
    %v1570 = vpop.xlane.xlu0 %1569
    %v1571 = vmul.f32 %v1567, %v1321
    %v1572 = vmul.f32 %v1570, %v1321
    %v1573 = vadd.f32 %v1571, 1e-05
    %v1574 = vadd.f32 %v1572, 1e-05
    %v1575 = vrsqrt.pop %v1573
    %v1576 = vrsqrt.pop %v1574
    %v1577 = vmul.f32 %v1561, %v1575
    %v1578 = vmul.f32 %v1562, %v1576
    %v1580 = vlaneseq
    %v1581 = vshrl.u32 %v1580, 7
    %v1582 = vsub.s32 0, %v1581
    %v1583 = vrot.slane %v1551, %v1582
    %v1585 = vmul.f32 %v1577, %v1583
    %v1586 = vmul.f32 %v1578, %v1583
    %v1588 = vlaneseq
    %v1589 = vshrl.u32 %v1588, 7
    %v1590 = vsub.s32 0, %v1589
    %v1591 = vrot.slane %v1552, %v1590
    %v1593 = vadd.f32 %v1585, %v1591
    %v1594 = vadd.f32 %v1586, %v1591
    %v1595 = vld [vmem:[%s14] sm:$0xff]
    %v1596 = vld [vmem:[%s14 + $0x8] sm:$0xff]
    %v1597 = vld [vmem:[%s14 + $0x10] sm:$0xff]
    %v1598 = vld [vmem:[%s14 + $0x18] sm:$0xff]
    %v1599 = vld [vmem:[%s15] sm:$0x1]
    %v1600 = vld [vmem:[%s16] sm:$0xff]
    %v1601 = vld [vmem:[%s16 + $0x8] sm:$0xff]
    %v1602 = vld [vmem:[%s16 + $0x10] sm:$0xff]
    %v1603 = vld [vmem:[%s17] sm:$0x1]
    %v1605 = vlaneseq
    %v1606 = vshrl.u32 %v1605, 7
    %v1607 = vsub.s32 0, %v1606
    %v1608 = vrot.slane %v1599, %v1607
    %v1611 = vsel %vm85, %v1593, 0
    %v1614 = vsel %vm85, %v1594, 0
    %1616 = vmatprep.subr.mxu0 0.0
    %1617 = vmatpush1.msra.mxu0 %v1595
    %1618 = vmatprep.subr.mxu0 0.0
    %1619 = vmatpush1.msra.mxu0 %v1596
    %1620 = vmatprep.subr.mxu0 0.0
    %1621 = vmatpush1.msra.mxu0 %v1597
    %1622 = vmatprep.subr.mxu0 0.0
    %1623 = vmatpush1.msra.mxu0 %v1598
    %1624 = vmatprep.subr.mxu0 0.0
    %1625 = vmatpush1.msra.mxu0 0.0
    %1626 = vmatprep.subr.mxu0 0.0
    %1627 = vmatpush1.msra.mxu0 0.0
    %1628 = vmatprep.subr.mxu0 0.0
    %1629 = vmatpush1.msra.mxu0 0.0
    %1630 = vmatprep.subr.mxu0 0.0
    %1631 = vmatpush1.msra.mxu0 0.0
    %1632 = vmatprep.subr.mxu0 0.0
    %1633 = vmatpush1.msra.mxu0 0.0
    %1634 = vmatprep.subr.mxu0 0.0
    %1635 = vmatpush1.msra.mxu0 0.0
    %1636 = vmatprep.subr.mxu0 0.0
    %1637 = vmatpush1.msra.mxu0 0.0
    %1638 = vmatprep.subr.mxu0 0.0
    %1639 = vmatpush1.msra.mxu0 0.0
    %1640 = vmatprep.subr.mxu0 0.0
    %1641 = vmatpush1.msra.mxu0 0.0
    %1642 = vmatprep.subr.mxu0 0.0
    %1643 = vmatpush1.msra.mxu0 0.0
    %1644 = vmatprep.subr.mxu0 0.0
    %1645 = vmatpush1.msra.mxu0 0.0
    %1646 = vmatprep.subr.mxu0 0.0
    %1647 = vmatpush1.msra.mxu0 0.0
    %1648 = vmatprep.subr.mxu0 0.0
    %1649 = vmatpush1.msra.mxu0 0.0
    %1650 = vmatprep.subr.mxu0 0.0
    %1651 = vmatpush1.msra.mxu0 0.0
    %1652 = vmatprep.subr.mxu0 0.0
    %1653 = vmatpush1.msra.mxu0 0.0
    %1654 = vmatprep.subr.mxu0 0.0
    %1655 = vmatpush1.msra.mxu0 0.0
    %1656 = vmatprep.subr.mxu0 0.0
    %1657 = vmatpush1.msra.mxu0 0.0
    %1658 = vmatprep.subr.mxu0 0.0
    %1659 = vmatpush1.msra.mxu0 0.0
    %1660 = vmatprep.subr.mxu0 0.0
    %1661 = vmatpush1.msra.mxu0 0.0
    %1662 = vmatprep.subr.mxu0 0.0
    %1663 = vmatpush1.msra.mxu0 0.0
    %1664 = vmatprep.subr.mxu0 0.0
    %1665 = vmatpush1.msra.mxu0 0.0
    %1666 = vmatprep.subr.mxu0 0.0
    %1667 = vmatpush1.msra.mxu0 0.0
    %1668 = vmatprep.subr.mxu0 0.0
    %1669 = vmatpush1.msra.mxu0 0.0
    %1670 = vmatprep.subr.mxu0 0.0
    %1671 = vmatpush1.msra.mxu0 0.0
    %1672 = vmatprep.subr.mxu0 0.0
    %1673 = vmatpush1.msra.mxu0 0.0
    %1674 = vmatprep.subr.mxu0 0.0
    %1675 = vmatpush1.msra.mxu0 0.0
    %1676 = vmatprep.subr.mxu0 0.0
    %1677 = vmatpush1.msra.mxu0 0.0
    %1678 = vmatprep.subr.mxu0 0.0
    %1679 = vmatpush1.msra.mxu0 0.0
    %1680 = vmatprep.mubr.f32.mxu0 0.0
    %1681 = vmatmul.mubr.f32.gmra.mrb[0].mxu0 %v1611
    %v1682 = vpop.f32.mrb[0].mxu0
    %v1683 = vadd.f32 %v1608, %v1682
    %v1684 = vpop.f32.mrb[0].mxu0
    %1685 = vmatprep.mubr.f32.mxu0 0.0
    %1686 = vmatmul.mubr.f32.gmra.mrb[0].mxu0 %v1614
    %v1687 = vpop.f32.mrb[0].mxu0
    %v1688 = vadd.f32 %v1608, %v1687
    %v1689 = vpop.f32.mrb[0].mxu0
    %1690 = vdwg.mxu0
    %v1691 = vmax.f32 %v1683, 0.0
    %v1692 = vmax.f32 %v1688, 0.0
    %v1694 = vlaneseq
    %v1695 = vshrl.u32 %v1694, 7
    %v1696 = vsub.s32 0, %v1695
    %v1697 = vrot.slane %v1603, %v1696
    %vm1699 = vcmask 195584
    %v1701 = vsel %vm1699, %v1691, 0
    %v1704 = vsel %vm1699, %v1692, 0
    %1706 = vmatprep.subr.mxu0 0.0
    %1707 = vmatpush1.msra.mxu0 %v1600
    %1708 = vmatprep.subr.mxu0 0.0
    %1709 = vmatpush1.msra.mxu0 %v1601
    %1710 = vmatprep.subr.mxu0 0.0
    %1711 = vmatpush1.msra.mxu0 %v1602
    %1712 = vmatprep.subr.mxu0 0.0
    %1713 = vmatpush1.msra.mxu0 0.0
    %1714 = vmatprep.subr.mxu0 0.0
    %1715 = vmatpush1.msra.mxu0 0.0
    %1716 = vmatprep.subr.mxu0 0.0
    %1717 = vmatpush1.msra.mxu0 0.0
    %1718 = vmatprep.subr.mxu0 0.0
    %1719 = vmatpush1.msra.mxu0 0.0
    %1720 = vmatprep.subr.mxu0 0.0
    %1721 = vmatpush1.msra.mxu0 0.0
    %1722 = vmatprep.subr.mxu0 0.0
    %1723 = vmatpush1.msra.mxu0 0.0
    %1724 = vmatprep.subr.mxu0 0.0
    %1725 = vmatpush1.msra.mxu0 0.0
    %1726 = vmatprep.subr.mxu0 0.0
    %1727 = vmatpush1.msra.mxu0 0.0
    %1728 = vmatprep.subr.mxu0 0.0
    %1729 = vmatpush1.msra.mxu0 0.0
    %1730 = vmatprep.subr.mxu0 0.0
    %1731 = vmatpush1.msra.mxu0 0.0
    %1732 = vmatprep.subr.mxu0 0.0
    %1733 = vmatpush1.msra.mxu0 0.0
    %1734 = vmatprep.subr.mxu0 0.0
    %1735 = vmatpush1.msra.mxu0 0.0
    %1736 = vmatprep.subr.mxu0 0.0
    %1737 = vmatpush1.msra.mxu0 0.0
    %1738 = vmatprep.subr.mxu0 0.0
    %1739 = vmatpush1.msra.mxu0 0.0
    %1740 = vmatprep.subr.mxu0 0.0
    %1741 = vmatpush1.msra.mxu0 0.0
    %1742 = vmatprep.subr.mxu0 0.0
    %1743 = vmatpush1.msra.mxu0 0.0
    %1744 = vmatprep.subr.mxu0 0.0
    %1745 = vmatpush1.msra.mxu0 0.0
    %1746 = vmatprep.subr.mxu0 0.0
    %1747 = vmatpush1.msra.mxu0 0.0
    %1748 = vmatprep.subr.mxu0 0.0
    %1749 = vmatpush1.msra.mxu0 0.0
    %1750 = vmatprep.subr.mxu0 0.0
    %1751 = vmatpush1.msra.mxu0 0.0
    %1752 = vmatprep.subr.mxu0 0.0
    %1753 = vmatpush1.msra.mxu0 0.0
    %1754 = vmatprep.subr.mxu0 0.0
    %1755 = vmatpush1.msra.mxu0 0.0
    %1756 = vmatprep.subr.mxu0 0.0
    %1757 = vmatpush1.msra.mxu0 0.0
    %1758 = vmatprep.subr.mxu0 0.0
    %1759 = vmatpush1.msra.mxu0 0.0
    %1760 = vmatprep.subr.mxu0 0.0
    %1761 = vmatpush1.msra.mxu0 0.0
    %1762 = vmatprep.subr.mxu0 0.0
    %1763 = vmatpush1.msra.mxu0 0.0
    %1764 = vmatprep.subr.mxu0 0.0
    %1765 = vmatpush1.msra.mxu0 0.0
    %1766 = vmatprep.subr.mxu0 0.0
    %1767 = vmatpush1.msra.mxu0 0.0
    %1768 = vmatprep.subr.mxu0 0.0
    %1769 = vmatpush1.msra.mxu0 0.0
    %1770 = vmatprep.mubr.f32.mxu0 0.0
    %1771 = vmatmul.mubr.f32.gmra.mrb[0].mxu0 %v1701
    %v1772 = vpop.f32.mrb[0].mxu0
    %v1773 = vadd.f32 %v1697, %v1772
    %v1774 = vpop.f32.mrb[0].mxu0
    %1775 = vmatprep.mubr.f32.mxu0 0.0
    %1776 = vmatmul.mubr.f32.gmra.mrb[0].mxu0 %v1704
    %v1777 = vpop.f32.mrb[0].mxu0
    %v1778 = vadd.f32 %v1697, %v1777
    %v1779 = vpop.f32.mrb[0].mxu0
    %1780 = vdwg.mxu0
    %1781 = vst.msk [vmem:[#allocation2] sm:$0xff] %vm85, %v1541
    %1782 = vst.msk [vmem:[#allocation2 + $0x8] sm:$0xff] %vm85, %v1546
    %1783 = vst.msk [vmem:[#allocation4] sm:$0xff] %vm259, %v1773
    %1784 = vst.msk [vmem:[#allocation4 + $0x8] sm:$0xff] %vm259, %v1778
    // Predicated region
    $region74: #{tpu_custom_call.1} parent=1 // pred_check
      _
    $region75: #{tpu_custom_call.1} parent=1 // pred_check_branch
      %1786 = sbr.rel (0) target = $region77
    $region76: #{tpu_custom_call.1} parent=1 // pred_region
      %s1788 = ssub.s32 256, 256
      %1789 = vsyncadd [#allocation3], %s1788
      %s1790 = sshll.u32 [#allocation2], 4
      %s1791 = int_to_ptr.vmem [resolvable:$true] %s1790
      %1796 = dma.vmem_to_hbm [thread:$0]  %s1791, 256, %s18, [#allocation3], 128, 128, 8
    $region77: #{tpu_custom_call.1} parent=1 // pred_fallthru
      _
    // Predicated region
    $region78: #{tpu_custom_call.1} parent=1 // pred_check
      _
    $region79: #{tpu_custom_call.1} parent=1 // pred_check_branch
      %1798 = sbr.rel (0) target = $region81
    $region80: #{tpu_custom_call.1} parent=1 // pred_region
      %s1800 = ssub.s32 256, 256
      %1801 = vsyncadd [#allocation5], %s1800
      %s1802 = sshll.u32 [#allocation4], 4
      %s1803 = int_to_ptr.vmem [resolvable:$true] %s1802
      %1808 = dma.vmem_to_hbm [thread:$0]  %s1803, 256, %s19, [#allocation5], 128, 128, 8
    $region81: #{tpu_custom_call.1} parent=1 // pred_fallthru
      _
    // Predicated region
    $region82: #{tpu_custom_call.1} parent=1 // pred_check
      _
    $region83: #{tpu_custom_call.1} parent=1 // pred_check_branch
      %1810 = sbr.rel (0) target = $region85
    $region84: #{tpu_custom_call.1} parent=1 // pred_region
      %1811 = dma.done [#allocation3], 256
    $region85: #{tpu_custom_call.1} parent=1 // pred_fallthru
      _
    // Predicated region
    $region86: #{tpu_custom_call.1} parent=1 // pred_check
      _
    $region87: #{tpu_custom_call.1} parent=1 // pred_check_branch
      %1813 = sbr.rel (0) target = $region89
    $region88: #{tpu_custom_call.1} parent=1 // pred_region
      %1814 = dma.done [#allocation5], 256
    $region89: #{tpu_custom_call.1} parent=1 // pred_fallthru
      _
    %1815 = vsyncpa [#allocation3], 1
    %1816 = vsyncpa [#allocation5], 1

</llo_original>
